<compile_context>
chip_gen: v5e
topology: v5e:2x2
jax: 0.10.0
libtpu: 0.0.40
codegen_flags: <defaults>
</compile_context>

<pallas_src>
import functools

import jax
import jax.numpy as jnp
from jax import lax
from jax.experimental import pallas as pl
from jax.experimental.pallas import tpu as pltpu

_LANE = 128


def _round_up(x: int, m: int) -> int:
    return (x + m - 1) // m * m


def _physical_vmem_bytes() -> int:
    """Per-core VMEM capacity; conservative fallback = v7x (64 MiB)."""
    try:
        return int(pltpu.get_tpu_info().vmem_capacity_bytes)
    except Exception:
        return 64 * 1024 * 1024


def _streamed_vmem_need(tm: int, tk: int, n_pad: int, cp: int) -> int:
    return (2 * tm * tk * 2        # A tile (bf16), double-buffered
            + 2 * tk * cp * 2      # z bf16 j-tile (k==0 operand), double-buffered
            + 2 * tm * cp * 4      # z f32 residual i-tile, double-buffered
            + 2 * tm * cp * 4      # output tile (f32), double-buffered
            + tm * cp * 4          # f32 accumulator scratch
            + 2 * n_pad * cp * 2   # ping-pong bf16 state (2 slots)
            + n_pad * cp * 4       # running-sum f32 state
            + 2 * cp * 4)          # bias


def make_ssgc_plan(num_nodes: int, in_channels: int, out_channels: int,
                   *, force_streamed: bool = False) -> dict:
    """Pick execution mode, padding and tile sizes from the VMEM budget."""
    cp = _round_up(max(out_channels, _LANE), _LANE)
    n128 = _round_up(max(num_nodes, 128), 128)
    phys = _physical_vmem_bytes()

    # Small-graph fused path: A read from HBM once instead of K passes.
    resident_need = (2 * n128 * n128 * 2            # A bf16 (pipeline buffers x2)
                     + 2 * n128 * in_channels * 4   # x block
                     + 2 * in_channels * cp * 4     # W block
                     + 2 * n128 * cp * 4            # output f32
                     + n128 * cp * (2 + 4 + 4)      # state bf16 + h f32 + z f32
                     + 2 * cp * 4)                  # bias
    if not force_streamed and resident_need <= int(0.45 * phys):
        limit = min(max(resident_need * 3 // 2 + (8 << 20), 16 << 20),
                    int(0.9 * phys))
        return dict(mode="resident", n_pad=n128, cp=cp, vmem_limit=int(limit))

    # Streamed path: biggest (tm, tk) that fits ~60% of physical VMEM.
    budget = int(0.6 * phys)
    best = None
    for cand_tk in (2048, 1024, 512, 256, 128):
        for cand_tm in (1024, 512, 256, 128):
            tm, tk = min(cand_tm, n128), min(cand_tk, n128)
            n_pad = _round_up(n128, max(tm, tk))
            if 5 * n_pad * n_pad > 8 * n128 * n128:   # >~26% extra padded A area
                continue
            need = _streamed_vmem_need(tm, tk, n_pad, cp)
            if need <= budget:
                best = (tm, tk, n_pad, need)
                break
        if best is not None:
            break
    if best is None:                                   # huge graph fallback
        tm = tk = 128
        n_pad = n128
        best = (tm, tk, n_pad, _streamed_vmem_need(tm, tk, n_pad, cp))
    tm, tk, n_pad, need = best
    limit = min(max(need * 3 // 2 + (8 << 20), 16 << 20), int(0.9 * phys))
    return dict(mode="streamed", n_pad=n_pad, cp=cp, tm=tm, tk=tk,
                vmem_limit=int(limit))


def prepare_padded_adjacency(adj_norm, n_pad: int):
    """One-time (cached=True) pad + bf16 cast of the normalized adjacency."""
    n = adj_norm.shape[0]
    a = jnp.zeros((n_pad, n_pad), jnp.bfloat16)
    return a.at[:n, :n].set(adj_norm.astype(jnp.bfloat16))


# --------------- Kernel 1 (streamed path): feature projection --------------- #
def project_kernel(x_ref, w_ref, z32_ref, zbf_ref):
    # Tiny fraction of total FLOPs.  Emit both precisions once: f32 for the
    # exact alpha*z residual, bf16 for the first-hop MXU operand.
    z = jnp.dot(x_ref[...], w_ref[...], preferred_element_type=jnp.float32)
    z32_ref[...] = z
    zbf_ref[...] = z.astype(jnp.bfloat16)


# --------------- Kernel 2 (streamed path): K-hop propagation ---------------- #
def ssgc_prop_kernel(a_ref, zj_ref, zres_ref, b_ref, o_ref,
                     acc_ref, state_ref, h_ref,
                     *, alpha: float, coeff: float,
                     tm: int, tk: int, n_pad: int, K: int):
    k = pl.program_id(0)            # hop (sequential, outermost)
    i = pl.program_id(1)            # output row tile
    j = pl.program_id(2)            # contraction tile (innermost, reduction)
    num_j = pl.num_programs(2)

    last_j = j == num_j - 1
    last_k = k == K - 1
    parity = lax.rem(k, 2)          # read slot = k & 1, write slot = 1 - (k & 1)

    row0 = pl.multiple_of(i * tm, tm)
    col0 = pl.multiple_of(j * tk, tk)
    read0 = pl.multiple_of(parity * n_pad + j * tk, tk)
    write0 = pl.multiple_of((1 - parity) * n_pad + i * tm, tm)

    # One-time: stage z (bf16) into state slot 0 tile-by-tile just before its
    # first use, and zero this row tile of the running sum.
    @pl.when((k == 0) & (i == 0))
    def _():
        state_ref[pl.ds(col0, tk), :] = zj_ref[...]

    @pl.when((k == 0) & (j == 0))
    def _():
        h_ref[pl.ds(row0, tm), :] = jnp.zeros_like(acc_ref)

    @pl.when(j == 0)
    def _():
        acc_ref[...] = jnp.zeros_like(acc_ref)

    # Single MXU site: acc += A[i-tile, j-tile] @ state_k[j-tile]
    # (bf16 inputs, f32 accumulation).
    acc_ref[...] += jnp.dot(a_ref[...], state_ref[pl.ds(read0, tk), :],
                            preferred_element_type=jnp.float32)

    # Row tile finished for this hop: fold into running sum, stage next hop's
    # state (not needed on the final hop), and only on the final hop write the
    # fused, lane-dense epilogue.
    @pl.when(last_j)
    def _():
        h_ref[pl.ds(row0, tm), :] = h_ref[pl.ds(row0, tm), :] + acc_ref[...]

    @pl.when(last_j & jnp.logical_not(last_k))
    def _():
        state_ref[pl.ds(write0, tm), :] = acc_ref[...].astype(jnp.bfloat16)

    @pl.when(last_j & last_k)
    def _():
        o_ref[...] = (alpha * zres_ref[...]
                      + coeff * h_ref[pl.ds(row0, tm), :]
                      + b_ref[...])


# ----------- Kernel 3 (resident path): fully fused small-graph SSGC --------- #
def ssgc_resident_kernel(a_ref, x_ref, w_ref, b_ref, o_ref,
                         state_ref, h_ref, z_ref,
                         *, alpha: float, coeff: float, K: int):
    z = jnp.dot(x_ref[...], w_ref[...], preferred_element_type=jnp.float32)
    z_ref[...] = z
    state_ref[...] = z.astype(jnp.bfloat16)
    h_ref[...] = jnp.zeros_like(h_ref)
    # K is a small static int -> trace-time unroll; A stays resident in VMEM,
    # so HBM sees it exactly once.
    for hop in range(K):
        nxt = jnp.dot(a_ref[...], state_ref[...],
                      preferred_element_type=jnp.float32)
        h_ref[...] = h_ref[...] + nxt
        if hop + 1 < K:
            state_ref[...] = nxt.astype(jnp.bfloat16)
    o_ref[...] = alpha * z_ref[...] + coeff * h_ref[...] + b_ref[...]


# --------------------------------- Wrapper ---------------------------------- #
def ssgc_forward(a_pad_bf16, x, w, b, *, K: int = 5, alpha: float = 0.1,
                 plan: dict | None = None):
    """a_pad_bf16: [n_pad, n_pad] bf16 (from prepare_padded_adjacency),
       x: [N, F] f32, w: [F, C], b: [C]  ->  [N, C] f32."""
    N, F = x.shape
    C = w.shape[1]
    if plan is None:
        plan = make_ssgc_plan(N, F, C)
    n_pad, cp = plan["n_pad"], plan["cp"]
    assert a_pad_bf16.shape == (n_pad, n_pad)
    assert a_pad_bf16.dtype == jnp.bfloat16
    coeff = (1.0 - alpha) / K

    # Small operands: pad channels to a lane-dense multiple of 128.
    x_p = jnp.zeros((n_pad, F), jnp.float32).at[:N, :].set(x)
    w_p = jnp.zeros((F, cp), jnp.float32).at[:, :C].set(w)
    b_p = jnp.zeros((1, cp), jnp.float32).at[0, :C].set(b)

    if plan["mode"] == "resident":
        kernel = functools.partial(ssgc_resident_kernel,
                                   alpha=alpha, coeff=coeff, K=K)
        out_full = pl.pallas_call(
            kernel,
            out_shape=jax.ShapeDtypeStruct((n_pad, cp), jnp.float32),
            grid=(1,),
            in_specs=[
                pl.BlockSpec((n_pad, n_pad), lambda g: (0, 0)),
                pl.BlockSpec((n_pad, F), lambda g: (0, 0)),
                pl.BlockSpec((F, cp), lambda g: (0, 0)),
                pl.BlockSpec((1, cp), lambda g: (0, 0)),
            ],
            out_specs=pl.BlockSpec((n_pad, cp), lambda g: (0, 0)),
            scratch_shapes=[
                pltpu.VMEM((n_pad, cp), jnp.bfloat16),   # propagated state
                pltpu.VMEM((n_pad, cp), jnp.float32),    # running sum_k A^k z
                pltpu.VMEM((n_pad, cp), jnp.float32),    # z (f32 residual)
            ],
            compiler_params=pltpu.CompilerParams(
                dimension_semantics=("arbitrary",),
                vmem_limit_bytes=plan["vmem_limit"]),
        )(a_pad_bf16, x_p, w_p, b_p)
        return out_full[:N, :C]

    # -------------------------- streamed path ------------------------------- #
    tm, tk = plan["tm"], plan["tk"]
    num_i, num_j = n_pad // tm, n_pad // tk

    # 1) projection z = x @ W (row-parallel -> both v7x TensorCores).
    z32, zbf = pl.pallas_call(
        project_kernel,
        out_shape=(jax.ShapeDtypeStruct((n_pad, cp), jnp.float32),
                   jax.ShapeDtypeStruct((n_pad, cp), jnp.bfloat16)),
        grid=(num_i,),
        in_specs=[pl.BlockSpec((tm, F), lambda i: (i, 0)),
                  pl.BlockSpec((F, cp), lambda i: (0, 0))],
        out_specs=[pl.BlockSpec((tm, cp), lambda i: (i, 0)),
                   pl.BlockSpec((tm, cp), lambda i: (i, 0))],
        compiler_params=pltpu.CompilerParams(
            dimension_semantics=("parallel",)),
    )(x_p, w_p)

    # 2) K-hop propagation; A streamed from HBM, state in VMEM scratch.
    #    z (bf16) is only fetched during the first (k==0, i==0) sweep; the f32
    #    residual and the output blocks are only fetched/written at k == K-1.
    kernel = functools.partial(ssgc_prop_kernel, alpha=alpha, coeff=coeff,
                               tm=tm, tk=tk, n_pad=n_pad, K=K)
    out_full = pl.pallas_call(
        kernel,
        out_shape=jax.ShapeDtypeStruct((n_pad, cp), jnp.float32),
        grid=(K, num_i, num_j),
        in_specs=[
            pl.BlockSpec((tm, tk), lambda k, i, j: (i, j)),          # A (bf16)
            pl.BlockSpec((tk, cp),
                         lambda k, i, j: (jnp.where((k == 0) & (i == 0), j, 0),
                                          0)),                        # z bf16
            pl.BlockSpec((tm, cp),
                         lambda k, i, j: (i * ((k + 1) // K), 0)),    # z f32
            pl.BlockSpec((1, cp), lambda k, i, j: (0, 0)),            # bias
        ],
        out_specs=pl.BlockSpec((tm, cp),
                               lambda k, i, j: (i * ((k + 1) // K), 0)),
        scratch_shapes=[
            pltpu.VMEM((tm, cp), jnp.float32),            # per-row-tile acc
            pltpu.VMEM((2 * n_pad, cp), jnp.bfloat16),    # ping-pong state
            pltpu.VMEM((n_pad, cp), jnp.float32),         # running sum_k A^k z
        ],
        compiler_params=pltpu.CompilerParams(
            dimension_semantics=("arbitrary", "arbitrary", "arbitrary"),
            vmem_limit_bytes=plan["vmem_limit"]),
    )(a_pad_bf16, zbf, z32, b_p)
    return out_full[:N, :C]


# --------------------------------- JAX glue --------------------------------- #
def gcn_norm_dense(edge_index, num_nodes, edge_weight=None):
    """Dense GCN normalization with self-loops: D^{-1/2}(A+I)D^{-1/2}."""
    src = edge_index[0]
    dst = edge_index[1]
    if edge_weight is None:
        edge_weight = jnp.ones(src.shape[0], dtype=jnp.float32)
    A = jnp.zeros((num_nodes, num_nodes), jnp.float32).at[dst, src].add(edge_weight)
    A = A + jnp.eye(num_nodes, dtype=jnp.float32)          # add self-loops
    deg = A.sum(axis=1)
    d_inv_sqrt = jnp.where(deg > 0, lax.rsqrt(deg), 0.0)
    return d_inv_sqrt[:, None] * A * d_inv_sqrt[None, :]


def init_linear_params(key, in_channels, out_channels):
    """Deterministic nn.Linear-style init: U(-1/sqrt(fan_in), 1/sqrt(fan_in))."""
    k_w, k_b = jax.random.split(key)
    bound = 1.0 / jnp.sqrt(jnp.float32(in_channels))
    w = jax.random.uniform(k_w, (in_channels, out_channels), jnp.float32,
                           minval=-bound, maxval=bound)
    b = jax.random.uniform(k_b, (out_channels,), jnp.float32,
                           minval=-bound, maxval=bound)
    return w, b


# Pure-JAX f32 reference (same math, no Pallas) for a sanity check.
def ssgc_reference(adj_norm, x, w, b, *, K=5, alpha=0.1):
    h = alpha * x
    xc = x
    for _ in range(K):
        xc = adj_norm @ xc
        h = h + (1.0 - alpha) / K * xc
    return h @ w + b[None, :]


if __name__ == "__main__":
    N = 128            # number of graph nodes
    IN_CHANNELS = 32   # input feature dim
    OUT_CHANNELS = 16  # output classes
    E = 512            # number of (directed) edges
    K, ALPHA = 5, 0.1

    key = jax.random.PRNGKey(0)
    k_x, k_e, k_p = jax.random.split(key, 3)

    # Deterministic synthetic graph + features.
    x = jax.random.normal(k_x, (N, IN_CHANNELS), jnp.float32)
    edge_index = jax.random.randint(k_e, (2, E), 0, N, dtype=jnp.int32)

    # SSGConv's internal nn.Linear(in_channels, out_channels, bias=True).
    w, b = init_linear_params(k_p, IN_CHANNELS, OUT_CHANNELS)

    # GCN-normalized dense adjacency (cached=True => computed once).
    adj_norm = gcn_norm_dense(edge_index, N)
    ref = ssgc_reference(adj_norm, x, w, b, K=K, alpha=ALPHA)

    # Exercise BOTH execution modes: the auto-selected (resident for this tiny
    # graph) path and the large-graph streamed path.
    for force_streamed in (False, True):
        plan = make_ssgc_plan(N, IN_CHANNELS, OUT_CHANNELS,
                              force_streamed=force_streamed)
        # cached=True semantics: pad + bf16-cast A once, reuse across calls.
        a_pad = prepare_padded_adjacency(adj_norm, plan["n_pad"])
        out = ssgc_forward(a_pad, x, w, b, K=K, alpha=ALPHA, plan=plan)
        out = jax.block_until_ready(out)

        assert out.shape == (N, OUT_CHANNELS)
        # Propagation runs with bf16 MXU inputs (f32 accumulation), so compare
        # against the f32 reference with a bf16-appropriate tolerance.
        err = float(jnp.max(jnp.abs(out - ref)))
        assert jnp.allclose(out, ref, atol=5e-2, rtol=5e-2), \
            f"mode={plan['mode']}: max abs err {err}"

    print("KERNEL_OK")
</pallas_src>

<mosaic_0001>
module attributes {stable_mosaic.version = 11 : i64} {
  func.func @ssgc_resident_kernel(%arg0: i32, %arg1: memref<128x128xbf16, #tpu.memory_space<vmem>>, %arg2: memref<128x32xf32, #tpu.memory_space<vmem>>, %arg3: memref<32x128xf32, #tpu.memory_space<vmem>>, %arg4: memref<1x128xf32, #tpu.memory_space<vmem>>, %arg5: memref<128x128xf32, #tpu.memory_space<vmem>>, %arg6: memref<128x128xbf16, #tpu.memory_space<vmem>>, %arg7: memref<128x128xf32, #tpu.memory_space<vmem>>, %arg8: memref<128x128xf32, #tpu.memory_space<vmem>>) attributes {dimension_semantics = [#tpu.dimension_semantics<arbitrary>], iteration_bounds = array<i64: 1>, scalar_prefetch = 0 : i64, scratch_operands = 3 : i64, tpu.core_type = #tpu.core_type<tc>, window_params = [{pipeline_mode = #tpu.pipeline_mode<synchronous>, transform_indices = @transform_0, window_bounds = array<i64: 128, 128>}, {pipeline_mode = #tpu.pipeline_mode<synchronous>, transform_indices = @transform_1, window_bounds = array<i64: 128, 32>}, {pipeline_mode = #tpu.pipeline_mode<synchronous>, transform_indices = @transform_2, window_bounds = array<i64: 32, 128>}, {pipeline_mode = #tpu.pipeline_mode<synchronous>, transform_indices = @transform_3, window_bounds = array<i64: 1, 128>}, {pipeline_mode = #tpu.pipeline_mode<synchronous>, transform_indices = @transform_4, window_bounds = array<i64: 128, 128>}]} {
    %c0 = arith.constant 0 : index
    %c0_0 = arith.constant 0 : index
    %0 = vector.load %arg2[%c0, %c0_0] : memref<128x32xf32, #tpu.memory_space<vmem>>, vector<128x32xf32>
    %c0_1 = arith.constant 0 : index
    %c0_2 = arith.constant 0 : index
    %1 = vector.load %arg3[%c0_1, %c0_2] : memref<32x128xf32, #tpu.memory_space<vmem>>, vector<32x128xf32>
    %cst = arith.constant dense<0.000000e+00> : vector<128x128xf32>
    %2 = tpu.matmul %0, %1, %cst {dimension_numbers = #tpu.dot_dimension_numbers<[1], [0], [0], [1], [0, 0, 1, 1], [], []>} : vector<128x32xf32>, vector<32x128xf32>, vector<128x128xf32> -> vector<128x128xf32>
    %c0_3 = arith.constant 0 : index
    %c0_4 = arith.constant 0 : index
    %3 = vector.load %arg8[%c0_3, %c0_4] : memref<128x128xf32, #tpu.memory_space<vmem>>, vector<128x128xf32>
    tpu.vector_store %arg8[%c0_3, %c0_4], %2 {strides = array<i32>} : memref<128x128xf32, #tpu.memory_space<vmem>>, vector<128x128xf32>,
    %4 = arith.truncf %2 : vector<128x128xf32> to vector<128x128xbf16>
    %c0_5 = arith.constant 0 : index
    %c0_6 = arith.constant 0 : index
    %5 = vector.load %arg6[%c0_5, %c0_6] : memref<128x128xbf16, #tpu.memory_space<vmem>>, vector<128x128xbf16>
    tpu.vector_store %arg6[%c0_5, %c0_6], %4 {strides = array<i32>} : memref<128x128xbf16, #tpu.memory_space<vmem>>, vector<128x128xbf16>,
    %cst_7 = arith.constant 0.000000e+00 : f32
    %6 = vector.broadcast %cst_7 : f32 to vector<128x128xf32>
    %c0_8 = arith.constant 0 : index
    %c0_9 = arith.constant 0 : index
    %7 = vector.load %arg7[%c0_8, %c0_9] : memref<128x128xf32, #tpu.memory_space<vmem>>, vector<128x128xf32>
    tpu.vector_store %arg7[%c0_8, %c0_9], %6 {strides = array<i32>} : memref<128x128xf32, #tpu.memory_space<vmem>>, vector<128x128xf32>,
    %c0_10 = arith.constant 0 : index
    %c0_11 = arith.constant 0 : index
    %8 = vector.load %arg1[%c0_10, %c0_11] : memref<128x128xbf16, #tpu.memory_space<vmem>>, vector<128x128xbf16>
    %c0_12 = arith.constant 0 : index
    %c0_13 = arith.constant 0 : index
    %9 = vector.load %arg6[%c0_12, %c0_13] : memref<128x128xbf16, #tpu.memory_space<vmem>>, vector<128x128xbf16>
    %cst_14 = arith.constant dense<0.000000e+00> : vector<128x128xf32>
    %10 = tpu.matmul %8, %9, %cst_14 {dimension_numbers = #tpu.dot_dimension_numbers<[1], [0], [0], [1], [0, 0, 1, 1], [], []>} : vector<128x128xbf16>, vector<128x128xbf16>, vector<128x128xf32> -> vector<128x128xf32>
    %c0_15 = arith.constant 0 : index
    %c0_16 = arith.constant 0 : index
    %11 = vector.load %arg7[%c0_15, %c0_16] : memref<128x128xf32, #tpu.memory_space<vmem>>, vector<128x128xf32>
    %12 = arith.addf %11, %10 : vector<128x128xf32>
    %c0_17 = arith.constant 0 : index
    %c0_18 = arith.constant 0 : index
    %13 = vector.load %arg7[%c0_17, %c0_18] : memref<128x128xf32, #tpu.memory_space<vmem>>, vector<128x128xf32>
    tpu.vector_store %arg7[%c0_17, %c0_18], %12 {strides = array<i32>} : memref<128x128xf32, #tpu.memory_space<vmem>>, vector<128x128xf32>,
    %14 = arith.truncf %10 : vector<128x128xf32> to vector<128x128xbf16>
    %c0_19 = arith.constant 0 : index
    %c0_20 = arith.constant 0 : index
    %15 = vector.load %arg6[%c0_19, %c0_20] : memref<128x128xbf16, #tpu.memory_space<vmem>>, vector<128x128xbf16>
    tpu.vector_store %arg6[%c0_19, %c0_20], %14 {strides = array<i32>} : memref<128x128xbf16, #tpu.memory_space<vmem>>, vector<128x128xbf16>,
    %c0_21 = arith.constant 0 : index
    %c0_22 = arith.constant 0 : index
    %16 = vector.load %arg1[%c0_21, %c0_22] : memref<128x128xbf16, #tpu.memory_space<vmem>>, vector<128x128xbf16>
    %c0_23 = arith.constant 0 : index
    %c0_24 = arith.constant 0 : index
    %17 = vector.load %arg6[%c0_23, %c0_24] : memref<128x128xbf16, #tpu.memory_space<vmem>>, vector<128x128xbf16>
    %cst_25 = arith.constant dense<0.000000e+00> : vector<128x128xf32>
    %18 = tpu.matmul %16, %17, %cst_25 {dimension_numbers = #tpu.dot_dimension_numbers<[1], [0], [0], [1], [0, 0, 1, 1], [], []>} : vector<128x128xbf16>, vector<128x128xbf16>, vector<128x128xf32> -> vector<128x128xf32>
    %c0_26 = arith.constant 0 : index
    %c0_27 = arith.constant 0 : index
    %19 = vector.load %arg7[%c0_26, %c0_27] : memref<128x128xf32, #tpu.memory_space<vmem>>, vector<128x128xf32>
    %20 = arith.addf %19, %18 : vector<128x128xf32>
    %c0_28 = arith.constant 0 : index
    %c0_29 = arith.constant 0 : index
    %21 = vector.load %arg7[%c0_28, %c0_29] : memref<128x128xf32, #tpu.memory_space<vmem>>, vector<128x128xf32>
    tpu.vector_store %arg7[%c0_28, %c0_29], %20 {strides = array<i32>} : memref<128x128xf32, #tpu.memory_space<vmem>>, vector<128x128xf32>,
    %22 = arith.truncf %18 : vector<128x128xf32> to vector<128x128xbf16>
    %c0_30 = arith.constant 0 : index
    %c0_31 = arith.constant 0 : index
    %23 = vector.load %arg6[%c0_30, %c0_31] : memref<128x128xbf16, #tpu.memory_space<vmem>>, vector<128x128xbf16>
    tpu.vector_store %arg6[%c0_30, %c0_31], %22 {strides = array<i32>} : memref<128x128xbf16, #tpu.memory_space<vmem>>, vector<128x128xbf16>,
    %c0_32 = arith.constant 0 : index
    %c0_33 = arith.constant 0 : index
    %24 = vector.load %arg1[%c0_32, %c0_33] : memref<128x128xbf16, #tpu.memory_space<vmem>>, vector<128x128xbf16>
    %c0_34 = arith.constant 0 : index
    %c0_35 = arith.constant 0 : index
    %25 = vector.load %arg6[%c0_34, %c0_35] : memref<128x128xbf16, #tpu.memory_space<vmem>>, vector<128x128xbf16>
    %cst_36 = arith.constant dense<0.000000e+00> : vector<128x128xf32>
    %26 = tpu.matmul %24, %25, %cst_36 {dimension_numbers = #tpu.dot_dimension_numbers<[1], [0], [0], [1], [0, 0, 1, 1], [], []>} : vector<128x128xbf16>, vector<128x128xbf16>, vector<128x128xf32> -> vector<128x128xf32>
    %c0_37 = arith.constant 0 : index
    %c0_38 = arith.constant 0 : index
    %27 = vector.load %arg7[%c0_37, %c0_38] : memref<128x128xf32, #tpu.memory_space<vmem>>, vector<128x128xf32>
    %28 = arith.addf %27, %26 : vector<128x128xf32>
    %c0_39 = arith.constant 0 : index
    %c0_40 = arith.constant 0 : index
    %29 = vector.load %arg7[%c0_39, %c0_40] : memref<128x128xf32, #tpu.memory_space<vmem>>, vector<128x128xf32>
    tpu.vector_store %arg7[%c0_39, %c0_40], %28 {strides = array<i32>} : memref<128x128xf32, #tpu.memory_space<vmem>>, vector<128x128xf32>,
    %30 = arith.truncf %26 : vector<128x128xf32> to vector<128x128xbf16>
    %c0_41 = arith.constant 0 : index
    %c0_42 = arith.constant 0 : index
    %31 = vector.load %arg6[%c0_41, %c0_42] : memref<128x128xbf16, #tpu.memory_space<vmem>>, vector<128x128xbf16>
    tpu.vector_store %arg6[%c0_41, %c0_42], %30 {strides = array<i32>} : memref<128x128xbf16, #tpu.memory_space<vmem>>, vector<128x128xbf16>,
    %c0_43 = arith.constant 0 : index
    %c0_44 = arith.constant 0 : index
    %32 = vector.load %arg1[%c0_43, %c0_44] : memref<128x128xbf16, #tpu.memory_space<vmem>>, vector<128x128xbf16>
    %c0_45 = arith.constant 0 : index
    %c0_46 = arith.constant 0 : index
    %33 = vector.load %arg6[%c0_45, %c0_46] : memref<128x128xbf16, #tpu.memory_space<vmem>>, vector<128x128xbf16>
    %cst_47 = arith.constant dense<0.000000e+00> : vector<128x128xf32>
    %34 = tpu.matmul %32, %33, %cst_47 {dimension_numbers = #tpu.dot_dimension_numbers<[1], [0], [0], [1], [0, 0, 1, 1], [], []>} : vector<128x128xbf16>, vector<128x128xbf16>, vector<128x128xf32> -> vector<128x128xf32>
    %c0_48 = arith.constant 0 : index
    %c0_49 = arith.constant 0 : index
    %35 = vector.load %arg7[%c0_48, %c0_49] : memref<128x128xf32, #tpu.memory_space<vmem>>, vector<128x128xf32>
    %36 = arith.addf %35, %34 : vector<128x128xf32>
    %c0_50 = arith.constant 0 : index
    %c0_51 = arith.constant 0 : index
    %37 = vector.load %arg7[%c0_50, %c0_51] : memref<128x128xf32, #tpu.memory_space<vmem>>, vector<128x128xf32>
    tpu.vector_store %arg7[%c0_50, %c0_51], %36 {strides = array<i32>} : memref<128x128xf32, #tpu.memory_space<vmem>>, vector<128x128xf32>,
    %38 = arith.truncf %34 : vector<128x128xf32> to vector<128x128xbf16>
    %c0_52 = arith.constant 0 : index
    %c0_53 = arith.constant 0 : index
    %39 = vector.load %arg6[%c0_52, %c0_53] : memref<128x128xbf16, #tpu.memory_space<vmem>>, vector<128x128xbf16>
    tpu.vector_store %arg6[%c0_52, %c0_53], %38 {strides = array<i32>} : memref<128x128xbf16, #tpu.memory_space<vmem>>, vector<128x128xbf16>,
    %c0_54 = arith.constant 0 : index
    %c0_55 = arith.constant 0 : index
    %40 = vector.load %arg1[%c0_54, %c0_55] : memref<128x128xbf16, #tpu.memory_space<vmem>>, vector<128x128xbf16>
    %c0_56 = arith.constant 0 : index
    %c0_57 = arith.constant 0 : index
    %41 = vector.load %arg6[%c0_56, %c0_57] : memref<128x128xbf16, #tpu.memory_space<vmem>>, vector<128x128xbf16>
    %cst_58 = arith.constant dense<0.000000e+00> : vector<128x128xf32>
    %42 = tpu.matmul %40, %41, %cst_58 {dimension_numbers = #tpu.dot_dimension_numbers<[1], [0], [0], [1], [0, 0, 1, 1], [], []>} : vector<128x128xbf16>, vector<128x128xbf16>, vector<128x128xf32> -> vector<128x128xf32>
    %c0_59 = arith.constant 0 : index
    %c0_60 = arith.constant 0 : index
    %43 = vector.load %arg7[%c0_59, %c0_60] : memref<128x128xf32, #tpu.memory_space<vmem>>, vector<128x128xf32>
    %44 = arith.addf %43, %42 : vector<128x128xf32>
    %c0_61 = arith.constant 0 : index
    %c0_62 = arith.constant 0 : index
    %45 = vector.load %arg7[%c0_61, %c0_62] : memref<128x128xf32, #tpu.memory_space<vmem>>, vector<128x128xf32>
    tpu.vector_store %arg7[%c0_61, %c0_62], %44 {strides = array<i32>} : memref<128x128xf32, #tpu.memory_space<vmem>>, vector<128x128xf32>,
    %c0_63 = arith.constant 0 : index
    %c0_64 = arith.constant 0 : index
    %46 = vector.load %arg8[%c0_63, %c0_64] : memref<128x128xf32, #tpu.memory_space<vmem>>, vector<128x128xf32>
    %cst_65 = arith.constant 1.000000e-01 : f32
    %47 = vector.broadcast %cst_65 : f32 to vector<128x128xf32>
    %48 = arith.mulf %47, %46 : vector<128x128xf32>
    %c0_66 = arith.constant 0 : index
    %c0_67 = arith.constant 0 : index
    %49 = vector.load %arg7[%c0_66, %c0_67] : memref<128x128xf32, #tpu.memory_space<vmem>>, vector<128x128xf32>
    %cst_68 = arith.constant 1.800000e-01 : f32
    %50 = vector.broadcast %cst_68 : f32 to vector<128x128xf32>
    %51 = arith.mulf %50, %49 : vector<128x128xf32>
    %52 = arith.addf %48, %51 : vector<128x128xf32>
    %c0_69 = arith.constant 0 : index
    %c0_70 = arith.constant 0 : index
    %53 = vector.load %arg4[%c0_69, %c0_70] : memref<1x128xf32, #tpu.memory_space<vmem>>, vector<1x128xf32>
    %54 = vector.broadcast %53 : vector<1x128xf32> to vector<128x128xf32>
    %55 = arith.addf %52, %54 : vector<128x128xf32>
    %c0_71 = arith.constant 0 : index
    %c0_72 = arith.constant 0 : index
    %56 = vector.load %arg5[%c0_71, %c0_72] : memref<128x128xf32, #tpu.memory_space<vmem>>, vector<128x128xf32>
    tpu.vector_store %arg5[%c0_71, %c0_72], %55 {strides = array<i32>} : memref<128x128xf32, #tpu.memory_space<vmem>>, vector<128x128xf32>,
    return
  }
  func.func @transform_0(%arg0: i32) -> (i32, i32) {
    %c0_i32 = arith.constant 0 : i32
    %c0_i32_0 = arith.constant 0 : i32
    %c0_i32_1 = arith.constant 0 : i32
    return %c0_i32, %c0_i32_0 : i32, i32
  }
  func.func @transform_1(%arg0: i32) -> (i32, i32) {
    %c0_i32 = arith.constant 0 : i32
    %c0_i32_0 = arith.constant 0 : i32
    %c0_i32_1 = arith.constant 0 : i32
    return %c0_i32, %c0_i32_0 : i32, i32
  }
  func.func @transform_2(%arg0: i32) -> (i32, i32) {
    %c0_i32 = arith.constant 0 : i32
    %c0_i32_0 = arith.constant 0 : i32
    %c0_i32_1 = arith.constant 0 : i32
    return %c0_i32, %c0_i32_0 : i32, i32
  }
  func.func @transform_3(%arg0: i32) -> (i32, i32) {
    %c0_i32 = arith.constant 0 : i32
    %c0_i32_0 = arith.constant 0 : i32
    %c0_i32_1 = arith.constant 0 : i32
    return %c0_i32, %c0_i32_0 : i32, i32
  }
  func.func @transform_4(%arg0: i32) -> (i32, i32) {
    %c0_i32 = arith.constant 0 : i32
    %c0_i32_0 = arith.constant 0 : i32
    %c0_i32_1 = arith.constant 0 : i32
    return %c0_i32, %c0_i32_0 : i32, i32
  }
}

</mosaic_0001>

<llo_original>
// kernel: tpu_custom_call.1
$region0: #{tpu_custom_call.1}
  #allocation0 [shape = 'u32[]', space=smem, size = 0x4, offset = 0x4, fixed_abs, tag = 'smem constant byte address 0x4 - core index']
  #allocation1 [shape = 'u32[72,128]{1,0:T(1,128)}', space=vmem, size = 0x9000, scoped, tag = 'internal scratch']
  #allocation2 [shape = 'bf16[128,128]{1,0:T(8,128)(2,1)}', space=vmem, size = 0x8000, scoped, tag = 'scratch operand']
  #allocation3 [shape = 'f32[128,128]{1,0:T(8,128)}', space=vmem, size = 0x10000, scoped, tag = 'scratch operand']
  #allocation4 [shape = 'f32[128,128]{1,0:T(8,128)}', space=vmem, size = 0x10000, scoped, tag = 'scratch operand']
  %s0 = inlined_call_operand.vmem [shape: bf16[128,128], index: 0, kind: input, shape index: {}]
  %s1 = inlined_call_operand.vmem [shape: f32[128,32], index: 1, kind: input, shape index: {}]
  %s2 = inlined_call_operand.vmem [shape: f32[32,128], index: 2, kind: input, shape index: {}]
  %s3 = inlined_call_operand.vmem [shape: f32[1,128], index: 3, kind: input, shape index: {}]
  %s4 = inlined_call_operand.hbm [shape: f32[128,128], index: 4, kind: output, shape index: {}]
  %s5 = sld [smem:[#allocation0]]
  $region26: #{tpu_custom_call.1} parent=0
    _
  %s7 = ssub.s32 1, %s5
  %s8 = scalar_select 0, %s7, %s5
  $region1: #{tpu_custom_call.1} parent=0
    #allocation5 [shape = 'u8[65536]{0}', space=vmem, size = 0x10000, scoped, tag = 'output window, operand 0, single buffered']
    #allocation6 [shape = 's32[1]{0}', space=sflag, size = 0x4, scoped, tag = 'scoped memory for tpu_custom_call.1']
    %9 = vsyncpa [#allocation6], 0
    // Predicated region
    $region2: #{tpu_custom_call.1} parent=1 // pred_check
      _
    $region3: #{tpu_custom_call.1} parent=1 // pred_check_branch
      %11 = sbr.rel (0) target = $region5
    $region4: #{tpu_custom_call.1} parent=1 // pred_region
      _
    $region5: #{tpu_custom_call.1} parent=1 // pred_fallthru
      _
    // Predicated region
    $region6: #{tpu_custom_call.1} parent=1 // pred_check
      _
    $region7: #{tpu_custom_call.1} parent=1 // pred_check_branch
      %13 = sbr.rel (0) target = $region9
    $region8: #{tpu_custom_call.1} parent=1 // pred_region
      _
    $region9: #{tpu_custom_call.1} parent=1 // pred_fallthru
      _
    // Predicated region
    $region10: #{tpu_custom_call.1} parent=1 // pred_check
      _
    $region11: #{tpu_custom_call.1} parent=1 // pred_check_branch
      %15 = sbr.rel (0) target = $region13
    $region12: #{tpu_custom_call.1} parent=1 // pred_region
      _
    $region13: #{tpu_custom_call.1} parent=1 // pred_fallthru
      _
    // Predicated region
    $region14: #{tpu_custom_call.1} parent=1 // pred_check
      _
    $region15: #{tpu_custom_call.1} parent=1 // pred_check_branch
      %17 = sbr.rel (0) target = $region17
    $region16: #{tpu_custom_call.1} parent=1 // pred_region
      _
    $region17: #{tpu_custom_call.1} parent=1 // pred_fallthru
      _
    %v18 = vld [vmem:[%s1] sm:$0xff]
    %v19 = vld [vmem:[%s1 + $0x8] sm:$0xff]
    %v20 = vld [vmem:[%s1 + $0x10] sm:$0xff]
    %v21 = vld [vmem:[%s1 + $0x18] sm:$0xff]
    %v22 = vld [vmem:[%s1 + $0x20] sm:$0xff]
    %v23 = vld [vmem:[%s1 + $0x28] sm:$0xff]
    %v24 = vld [vmem:[%s1 + $0x30] sm:$0xff]
    %v25 = vld [vmem:[%s1 + $0x38] sm:$0xff]
    %v26 = vld [vmem:[%s1 + $0x40] sm:$0xff]
    %v27 = vld [vmem:[%s1 + $0x48] sm:$0xff]
    %v28 = vld [vmem:[%s1 + $0x50] sm:$0xff]
    %v29 = vld [vmem:[%s1 + $0x58] sm:$0xff]
    %v30 = vld [vmem:[%s1 + $0x60] sm:$0xff]
    %v31 = vld [vmem:[%s1 + $0x68] sm:$0xff]
    %v32 = vld [vmem:[%s1 + $0x70] sm:$0xff]
    %v33 = vld [vmem:[%s1 + $0x78] sm:$0xff]
    %v34 = vld [vmem:[%s2] sm:$0xff]
    %v35 = vld [vmem:[%s2 + $0x8] sm:$0xff]
    %v36 = vld [vmem:[%s2 + $0x10] sm:$0xff]
    %v37 = vld [vmem:[%s2 + $0x18] sm:$0xff]
    %vm38 = vcmask 261120
    %v40 = vsel %vm38, %v18, 0
    %v43 = vsel %vm38, %v19, 0
    %v46 = vsel %vm38, %v20, 0
    %v49 = vsel %vm38, %v21, 0
    %v52 = vsel %vm38, %v22, 0
    %v55 = vsel %vm38, %v23, 0
    %v58 = vsel %vm38, %v24, 0
    %v61 = vsel %vm38, %v25, 0
    %v64 = vsel %vm38, %v26, 0
    %v67 = vsel %vm38, %v27, 0
    %v70 = vsel %vm38, %v28, 0
    %v73 = vsel %vm38, %v29, 0
    %v76 = vsel %vm38, %v30, 0
    %v79 = vsel %vm38, %v31, 0
    %v82 = vsel %vm38, %v32, 0
    %v85 = vsel %vm38, %v33, 0
    %87 = vmatpush.msra.mxu0 0.0
    %88 = vmatpush.msra.mxu0 0.0
    %89 = vmatpush.msra.mxu0 0.0
    %90 = vmatpush.msra.mxu0 0.0
    %91 = vmatpush.msra.mxu0 0.0
    %92 = vmatpush.msra.mxu0 0.0
    %93 = vmatpush.msra.mxu0 0.0
    %94 = vmatpush.msra.mxu0 0.0
    %95 = vmatpush.msra.mxu0 0.0
    %96 = vmatpush.msra.mxu0 0.0
    %97 = vmatpush.msra.mxu0 0.0
    %98 = vmatpush.msra.mxu0 0.0
    %99 = vmatpush.msra.mxu0 %v37
    %100 = vmatpush.msra.mxu0 %v36
    %101 = vmatpush.msra.mxu0 %v35
    %102 = vmatpush.msra.mxu0 %v34
    %103 = vmatmul.f32.gmra.mxu0 %v40
    %v104 = vpop.f32.mrf.mxu0
    %v105 = vadd.f32 0.0, %v104
    %106 = vmatmul.f32.gmra.mxu0 %v43
    %v107 = vpop.f32.mrf.mxu0
    %v108 = vadd.f32 0.0, %v107
    %109 = vmatmul.f32.gmra.mxu0 %v46
    %v110 = vpop.f32.mrf.mxu0
    %v111 = vadd.f32 0.0, %v110
    %112 = vmatmul.f32.gmra.mxu0 %v49
    %v113 = vpop.f32.mrf.mxu0
    %v114 = vadd.f32 0.0, %v113
    %115 = vmatmul.f32.gmra.mxu0 %v52
    %v116 = vpop.f32.mrf.mxu0
    %v117 = vadd.f32 0.0, %v116
    %118 = vmatmul.f32.gmra.mxu0 %v55
    %v119 = vpop.f32.mrf.mxu0
    %v120 = vadd.f32 0.0, %v119
    %121 = vmatmul.f32.gmra.mxu0 %v58
    %v122 = vpop.f32.mrf.mxu0
    %v123 = vadd.f32 0.0, %v122
    %124 = vmatmul.f32.gmra.mxu0 %v61
    %v125 = vpop.f32.mrf.mxu0
    %v126 = vadd.f32 0.0, %v125
    %127 = vmatmul.f32.gmra.mxu0 %v64
    %v128 = vpop.f32.mrf.mxu0
    %v129 = vadd.f32 0.0, %v128
    %130 = vmatmul.f32.gmra.mxu0 %v67
    %v131 = vpop.f32.mrf.mxu0
    %v132 = vadd.f32 0.0, %v131
    %133 = vmatmul.f32.gmra.mxu0 %v70
    %v134 = vpop.f32.mrf.mxu0
    %v135 = vadd.f32 0.0, %v134
    %136 = vmatmul.f32.gmra.mxu0 %v73
    %v137 = vpop.f32.mrf.mxu0
    %v138 = vadd.f32 0.0, %v137
    %139 = vmatmul.f32.gmra.mxu0 %v76
    %v140 = vpop.f32.mrf.mxu0
    %v141 = vadd.f32 0.0, %v140
    %142 = vmatmul.f32.gmra.mxu0 %v79
    %v143 = vpop.f32.mrf.mxu0
    %v144 = vadd.f32 0.0, %v143
    %145 = vmatmul.f32.gmra.mxu0 %v82
    %v146 = vpop.f32.mrf.mxu0
    %v147 = vadd.f32 0.0, %v146
    %148 = vmatmul.f32.gmra.mxu0 %v85
    %v149 = vpop.f32.mrf.mxu0
    %v150 = vadd.f32 0.0, %v149
    %151 = vdwg.mxu0
    %152 = vst [vmem:[#allocation4] sm:$0xff] %v105
    %153 = vst [vmem:[#allocation4 + $0x8] sm:$0xff] %v108
    %154 = vst [vmem:[#allocation4 + $0x10] sm:$0xff] %v111
    %155 = vst [vmem:[#allocation4 + $0x18] sm:$0xff] %v114
    %156 = vst [vmem:[#allocation4 + $0x20] sm:$0xff] %v117
    %157 = vst [vmem:[#allocation4 + $0x28] sm:$0xff] %v120
    %158 = vst [vmem:[#allocation4 + $0x30] sm:$0xff] %v123
    %159 = vst [vmem:[#allocation4 + $0x38] sm:$0xff] %v126
    %160 = vst [vmem:[#allocation4 + $0x40] sm:$0xff] %v129
    %161 = vst [vmem:[#allocation4 + $0x48] sm:$0xff] %v132
    %162 = vst [vmem:[#allocation4 + $0x50] sm:$0xff] %v135
    %163 = vst [vmem:[#allocation4 + $0x58] sm:$0xff] %v138
    %164 = vst [vmem:[#allocation4 + $0x60] sm:$0xff] %v141
    %165 = vst [vmem:[#allocation4 + $0x68] sm:$0xff] %v144
    %166 = vst [vmem:[#allocation4 + $0x70] sm:$0xff] %v147
    %167 = vst [vmem:[#allocation4 + $0x78] sm:$0xff] %v150
    %v168 = vpack.c.bf16 %v105, %v105
    %v169 = vpack.c.bf16 %v108, %v108
    %v170 = vpack.c.bf16 %v111, %v111
    %v171 = vpack.c.bf16 %v114, %v114
    %v172 = vpack.c.bf16 %v117, %v117
    %v173 = vpack.c.bf16 %v120, %v120
    %v174 = vpack.c.bf16 %v123, %v123
    %v175 = vpack.c.bf16 %v126, %v126
    %v176 = vpack.c.bf16 %v129, %v129
    %v177 = vpack.c.bf16 %v132, %v132
    %v178 = vpack.c.bf16 %v135, %v135
    %v179 = vpack.c.bf16 %v138, %v138
    %v180 = vpack.c.bf16 %v141, %v141
    %v181 = vpack.c.bf16 %v144, %v144
    %v182 = vpack.c.bf16 %v147, %v147
    %v183 = vpack.c.bf16 %v150, %v150
    %184 = vst [vmem:[#allocation2] sm:$0xf] %v168
    %185 = vst [vmem:[#allocation2 + $0x4] sm:$0xf] %v169
    %186 = vst [vmem:[#allocation2 + $0x8] sm:$0xf] %v170
    %187 = vst [vmem:[#allocation2 + $0xc] sm:$0xf] %v171
    %188 = vst [vmem:[#allocation2 + $0x10] sm:$0xf] %v172
    %189 = vst [vmem:[#allocation2 + $0x14] sm:$0xf] %v173
    %190 = vst [vmem:[#allocation2 + $0x18] sm:$0xf] %v174
    %191 = vst [vmem:[#allocation2 + $0x1c] sm:$0xf] %v175
    %192 = vst [vmem:[#allocation2 + $0x20] sm:$0xf] %v176
    %193 = vst [vmem:[#allocation2 + $0x24] sm:$0xf] %v177
    %194 = vst [vmem:[#allocation2 + $0x28] sm:$0xf] %v178
    %195 = vst [vmem:[#allocation2 + $0x2c] sm:$0xf] %v179
    %196 = vst [vmem:[#allocation2 + $0x30] sm:$0xf] %v180
    %197 = vst [vmem:[#allocation2 + $0x34] sm:$0xf] %v181
    %198 = vst [vmem:[#allocation2 + $0x38] sm:$0xf] %v182
    %199 = vst [vmem:[#allocation2 + $0x3c] sm:$0xf] %v183
    %200 = vst [vmem:[#allocation3] sm:$0xff] 0.0
    %201 = vst [vmem:[#allocation3 + $0x8] sm:$0xff] 0.0
    %202 = vst [vmem:[#allocation3 + $0x10] sm:$0xff] 0.0
    %203 = vst [vmem:[#allocation3 + $0x18] sm:$0xff] 0.0
    %204 = vst [vmem:[#allocation3 + $0x20] sm:$0xff] 0.0
    %205 = vst [vmem:[#allocation3 + $0x28] sm:$0xff] 0.0
    %206 = vst [vmem:[#allocation3 + $0x30] sm:$0xff] 0.0
    %207 = vst [vmem:[#allocation3 + $0x38] sm:$0xff] 0.0
    %208 = vst [vmem:[#allocation3 + $0x40] sm:$0xff] 0.0
    %209 = vst [vmem:[#allocation3 + $0x48] sm:$0xff] 0.0
    %210 = vst [vmem:[#allocation3 + $0x50] sm:$0xff] 0.0
    %211 = vst [vmem:[#allocation3 + $0x58] sm:$0xff] 0.0
    %212 = vst [vmem:[#allocation3 + $0x60] sm:$0xff] 0.0
    %213 = vst [vmem:[#allocation3 + $0x68] sm:$0xff] 0.0
    %214 = vst [vmem:[#allocation3 + $0x70] sm:$0xff] 0.0
    %215 = vst [vmem:[#allocation3 + $0x78] sm:$0xff] 0.0
    %v216 = vld [vmem:[%s0] sm:$0xf]
    %v217 = vld [vmem:[%s0 + $0x4] sm:$0xf]
    %v218 = vld [vmem:[%s0 + $0x8] sm:$0xf]
    %v219 = vld [vmem:[%s0 + $0xc] sm:$0xf]
    %v220 = vld [vmem:[%s0 + $0x10] sm:$0xf]
    %v221 = vld [vmem:[%s0 + $0x14] sm:$0xf]
    %v222 = vld [vmem:[%s0 + $0x18] sm:$0xf]
    %v223 = vld [vmem:[%s0 + $0x1c] sm:$0xf]
    %v224 = vld [vmem:[%s0 + $0x20] sm:$0xf]
    %v225 = vld [vmem:[%s0 + $0x24] sm:$0xf]
    %v226 = vld [vmem:[%s0 + $0x28] sm:$0xf]
    %v227 = vld [vmem:[%s0 + $0x2c] sm:$0xf]
    %v228 = vld [vmem:[%s0 + $0x30] sm:$0xf]
    %v229 = vld [vmem:[%s0 + $0x34] sm:$0xf]
    %v230 = vld [vmem:[%s0 + $0x38] sm:$0xf]
    %v231 = vld [vmem:[%s0 + $0x3c] sm:$0xf]
    %v232 = vld [vmem:[#allocation2] sm:$0xf]
    %v233 = vld [vmem:[#allocation2 + $0x4] sm:$0xf]
    %v234 = vld [vmem:[#allocation2 + $0x8] sm:$0xf]
    %v235 = vld [vmem:[#allocation2 + $0xc] sm:$0xf]
    %v236 = vld [vmem:[#allocation2 + $0x10] sm:$0xf]
    %v237 = vld [vmem:[#allocation2 + $0x14] sm:$0xf]
    %v238 = vld [vmem:[#allocation2 + $0x18] sm:$0xf]
    %v239 = vld [vmem:[#allocation2 + $0x1c] sm:$0xf]
    %v240 = vld [vmem:[#allocation2 + $0x20] sm:$0xf]
    %v241 = vld [vmem:[#allocation2 + $0x24] sm:$0xf]
    %v242 = vld [vmem:[#allocation2 + $0x28] sm:$0xf]
    %v243 = vld [vmem:[#allocation2 + $0x2c] sm:$0xf]
    %v244 = vld [vmem:[#allocation2 + $0x30] sm:$0xf]
    %v245 = vld [vmem:[#allocation2 + $0x34] sm:$0xf]
    %v246 = vld [vmem:[#allocation2 + $0x38] sm:$0xf]
    %v247 = vld [vmem:[#allocation2 + $0x3c] sm:$0xf]
    %v264 = vunpack.c.l.b16 %v216
    %v265 = vunpack.c.l.b16 %v217
    %v266 = vunpack.c.l.b16 %v218
    %v267 = vunpack.c.l.b16 %v219
    %v268 = vunpack.c.l.b16 %v220
    %v269 = vunpack.c.l.b16 %v221
    %v270 = vunpack.c.l.b16 %v222
    %v271 = vunpack.c.l.b16 %v223
    %v272 = vunpack.c.l.b16 %v224
    %v273 = vunpack.c.l.b16 %v225
    %v274 = vunpack.c.l.b16 %v226
    %v275 = vunpack.c.l.b16 %v227
    %v276 = vunpack.c.l.b16 %v228
    %v277 = vunpack.c.l.b16 %v229
    %v278 = vunpack.c.l.b16 %v230
    %v279 = vunpack.c.l.b16 %v231
    %v280 = vpack.c.b16 %v265, %v264
    %v281 = vpack.c.b16 %v267, %v266
    %v282 = vpack.c.b16 %v269, %v268
    %v283 = vpack.c.b16 %v271, %v270
    %v284 = vpack.c.b16 %v273, %v272
    %v285 = vpack.c.b16 %v275, %v274
    %v286 = vpack.c.b16 %v277, %v276
    %v287 = vpack.c.b16 %v279, %v278
    %v312 = vunpack.c.l.b16 %v232
    %v313 = vunpack.c.l.b16 %v233
    %v314 = vunpack.c.l.b16 %v234
    %v315 = vunpack.c.l.b16 %v235
    %v316 = vunpack.c.l.b16 %v236
    %v317 = vunpack.c.l.b16 %v237
    %v318 = vunpack.c.l.b16 %v238
    %v319 = vunpack.c.l.b16 %v239
    %v320 = vunpack.c.l.b16 %v240
    %v321 = vunpack.c.l.b16 %v241
    %v322 = vunpack.c.l.b16 %v242
    %v323 = vunpack.c.l.b16 %v243
    %v324 = vunpack.c.l.b16 %v244
    %v325 = vunpack.c.l.b16 %v245
    %v326 = vunpack.c.l.b16 %v246
    %v327 = vunpack.c.l.b16 %v247
    %v328 = vpack.c.b16 %v313, %v312
    %v329 = vpack.c.b16 %v315, %v314
    %v330 = vpack.c.b16 %v317, %v316
    %v331 = vpack.c.b16 %v319, %v318
    %v332 = vpack.c.b16 %v321, %v320
    %v333 = vpack.c.b16 %v323, %v322
    %v334 = vpack.c.b16 %v325, %v324
    %v335 = vpack.c.b16 %v327, %v326
    %344 = vmatpush.bf16.msra.mxu0 %v335
    %345 = vmatpush.bf16.msra.mxu0 %v334
    %346 = vmatpush.bf16.msra.mxu0 %v333
    %347 = vmatpush.bf16.msra.mxu0 %v332
    %348 = vmatpush.bf16.msra.mxu0 %v331
    %349 = vmatpush.bf16.msra.mxu0 %v330
    %350 = vmatpush.bf16.msra.mxu0 %v329
    %351 = vmatpush.bf16.msra.mxu0 %v328
    %352 = vmatmul.bf16.gmra.mxu0 %v280
    %v353 = vpop.f32.mrf.mxu0
    %v354 = vadd.f32 0.0, %v353
    %v355 = vpop.f32.mrf.mxu0
    %v356 = vadd.f32 0.0, %v355
    %357 = vmatmul.bf16.gmra.mxu0 %v281
    %v358 = vpop.f32.mrf.mxu0
    %v359 = vadd.f32 0.0, %v358
    %v360 = vpop.f32.mrf.mxu0
    %v361 = vadd.f32 0.0, %v360
    %362 = vmatmul.bf16.gmra.mxu0 %v282
    %v363 = vpop.f32.mrf.mxu0
    %v364 = vadd.f32 0.0, %v363
    %v365 = vpop.f32.mrf.mxu0
    %v366 = vadd.f32 0.0, %v365
    %367 = vmatmul.bf16.gmra.mxu0 %v283
    %v368 = vpop.f32.mrf.mxu0
    %v369 = vadd.f32 0.0, %v368
    %v370 = vpop.f32.mrf.mxu0
    %v371 = vadd.f32 0.0, %v370
    %372 = vmatmul.bf16.gmra.mxu0 %v284
    %v373 = vpop.f32.mrf.mxu0
    %v374 = vadd.f32 0.0, %v373
    %v375 = vpop.f32.mrf.mxu0
    %v376 = vadd.f32 0.0, %v375
    %377 = vmatmul.bf16.gmra.mxu0 %v285
    %v378 = vpop.f32.mrf.mxu0
    %v379 = vadd.f32 0.0, %v378
    %v380 = vpop.f32.mrf.mxu0
    %v381 = vadd.f32 0.0, %v380
    %382 = vmatmul.bf16.gmra.mxu0 %v286
    %v383 = vpop.f32.mrf.mxu0
    %v384 = vadd.f32 0.0, %v383
    %v385 = vpop.f32.mrf.mxu0
    %v386 = vadd.f32 0.0, %v385
    %387 = vmatmul.bf16.gmra.mxu0 %v287
    %v388 = vpop.f32.mrf.mxu0
    %v389 = vadd.f32 0.0, %v388
    %v390 = vpop.f32.mrf.mxu0
    %v391 = vadd.f32 0.0, %v390
    %392 = vdwg.mxu0
    %v393 = vld [vmem:[#allocation3] sm:$0xff]
    %v394 = vld [vmem:[#allocation3 + $0x8] sm:$0xff]
    %v395 = vld [vmem:[#allocation3 + $0x10] sm:$0xff]
    %v396 = vld [vmem:[#allocation3 + $0x18] sm:$0xff]
    %v397 = vld [vmem:[#allocation3 + $0x20] sm:$0xff]
    %v398 = vld [vmem:[#allocation3 + $0x28] sm:$0xff]
    %v399 = vld [vmem:[#allocation3 + $0x30] sm:$0xff]
    %v400 = vld [vmem:[#allocation3 + $0x38] sm:$0xff]
    %v401 = vld [vmem:[#allocation3 + $0x40] sm:$0xff]
    %v402 = vld [vmem:[#allocation3 + $0x48] sm:$0xff]
    %v403 = vld [vmem:[#allocation3 + $0x50] sm:$0xff]
    %v404 = vld [vmem:[#allocation3 + $0x58] sm:$0xff]
    %v405 = vld [vmem:[#allocation3 + $0x60] sm:$0xff]
    %v406 = vld [vmem:[#allocation3 + $0x68] sm:$0xff]
    %v407 = vld [vmem:[#allocation3 + $0x70] sm:$0xff]
    %v408 = vld [vmem:[#allocation3 + $0x78] sm:$0xff]
    %v409 = vadd.f32 %v393, %v354
    %v410 = vadd.f32 %v394, %v356
    %v411 = vadd.f32 %v395, %v359
    %v412 = vadd.f32 %v396, %v361
    %v413 = vadd.f32 %v397, %v364
    %v414 = vadd.f32 %v398, %v366
    %v415 = vadd.f32 %v399, %v369
    %v416 = vadd.f32 %v400, %v371
    %v417 = vadd.f32 %v401, %v374
    %v418 = vadd.f32 %v402, %v376
    %v419 = vadd.f32 %v403, %v379
    %v420 = vadd.f32 %v404, %v381
    %v421 = vadd.f32 %v405, %v384
    %v422 = vadd.f32 %v406, %v386
    %v423 = vadd.f32 %v407, %v389
    %v424 = vadd.f32 %v408, %v391
    %425 = vst [vmem:[#allocation3] sm:$0xff] %v409
    %426 = vst [vmem:[#allocation3 + $0x8] sm:$0xff] %v410
    %427 = vst [vmem:[#allocation3 + $0x10] sm:$0xff] %v411
    %428 = vst [vmem:[#allocation3 + $0x18] sm:$0xff] %v412
    %429 = vst [vmem:[#allocation3 + $0x20] sm:$0xff] %v413
    %430 = vst [vmem:[#allocation3 + $0x28] sm:$0xff] %v414
    %431 = vst [vmem:[#allocation3 + $0x30] sm:$0xff] %v415
    %432 = vst [vmem:[#allocation3 + $0x38] sm:$0xff] %v416
    %433 = vst [vmem:[#allocation3 + $0x40] sm:$0xff] %v417
    %434 = vst [vmem:[#allocation3 + $0x48] sm:$0xff] %v418
    %435 = vst [vmem:[#allocation3 + $0x50] sm:$0xff] %v419
    %436 = vst [vmem:[#allocation3 + $0x58] sm:$0xff] %v420
    %437 = vst [vmem:[#allocation3 + $0x60] sm:$0xff] %v421
    %438 = vst [vmem:[#allocation3 + $0x68] sm:$0xff] %v422
    %439 = vst [vmem:[#allocation3 + $0x70] sm:$0xff] %v423
    %440 = vst [vmem:[#allocation3 + $0x78] sm:$0xff] %v424
    %v441 = vpack.c.bf16 %v354, %v354
    %v442 = vpack.c.bf16 %v356, %v356
    %v443 = vpack.c.bf16 %v359, %v359
    %v444 = vpack.c.bf16 %v361, %v361
    %v445 = vpack.c.bf16 %v364, %v364
    %v446 = vpack.c.bf16 %v366, %v366
    %v447 = vpack.c.bf16 %v369, %v369
    %v448 = vpack.c.bf16 %v371, %v371
    %v449 = vpack.c.bf16 %v374, %v374
    %v450 = vpack.c.bf16 %v376, %v376
    %v451 = vpack.c.bf16 %v379, %v379
    %v452 = vpack.c.bf16 %v381, %v381
    %v453 = vpack.c.bf16 %v384, %v384
    %v454 = vpack.c.bf16 %v386, %v386
    %v455 = vpack.c.bf16 %v389, %v389
    %v456 = vpack.c.bf16 %v391, %v391
    %457 = vst [vmem:[#allocation2] sm:$0xf] %v441
    %458 = vst [vmem:[#allocation2 + $0x4] sm:$0xf] %v442
    %459 = vst [vmem:[#allocation2 + $0x8] sm:$0xf] %v443
    %460 = vst [vmem:[#allocation2 + $0xc] sm:$0xf] %v444
    %461 = vst [vmem:[#allocation2 + $0x10] sm:$0xf] %v445
    %462 = vst [vmem:[#allocation2 + $0x14] sm:$0xf] %v446
    %463 = vst [vmem:[#allocation2 + $0x18] sm:$0xf] %v447
    %464 = vst [vmem:[#allocation2 + $0x1c] sm:$0xf] %v448
    %465 = vst [vmem:[#allocation2 + $0x20] sm:$0xf] %v449
    %466 = vst [vmem:[#allocation2 + $0x24] sm:$0xf] %v450
    %467 = vst [vmem:[#allocation2 + $0x28] sm:$0xf] %v451
    %468 = vst [vmem:[#allocation2 + $0x2c] sm:$0xf] %v452
    %469 = vst [vmem:[#allocation2 + $0x30] sm:$0xf] %v453
    %470 = vst [vmem:[#allocation2 + $0x34] sm:$0xf] %v454
    %471 = vst [vmem:[#allocation2 + $0x38] sm:$0xf] %v455
    %472 = vst [vmem:[#allocation2 + $0x3c] sm:$0xf] %v456
    %v473 = vld [vmem:[%s0] sm:$0xf]
    %v474 = vld [vmem:[%s0 + $0x4] sm:$0xf]
    %v475 = vld [vmem:[%s0 + $0x8] sm:$0xf]
    %v476 = vld [vmem:[%s0 + $0xc] sm:$0xf]
    %v477 = vld [vmem:[%s0 + $0x10] sm:$0xf]
    %v478 = vld [vmem:[%s0 + $0x14] sm:$0xf]
    %v479 = vld [vmem:[%s0 + $0x18] sm:$0xf]
    %v480 = vld [vmem:[%s0 + $0x1c] sm:$0xf]
    %v481 = vld [vmem:[%s0 + $0x20] sm:$0xf]
    %v482 = vld [vmem:[%s0 + $0x24] sm:$0xf]
    %v483 = vld [vmem:[%s0 + $0x28] sm:$0xf]
    %v484 = vld [vmem:[%s0 + $0x2c] sm:$0xf]
    %v485 = vld [vmem:[%s0 + $0x30] sm:$0xf]
    %v486 = vld [vmem:[%s0 + $0x34] sm:$0xf]
    %v487 = vld [vmem:[%s0 + $0x38] sm:$0xf]
    %v488 = vld [vmem:[%s0 + $0x3c] sm:$0xf]
    %v489 = vld [vmem:[#allocation2] sm:$0xf]
    %v490 = vld [vmem:[#allocation2 + $0x4] sm:$0xf]
    %v491 = vld [vmem:[#allocation2 + $0x8] sm:$0xf]
    %v492 = vld [vmem:[#allocation2 + $0xc] sm:$0xf]
    %v493 = vld [vmem:[#allocation2 + $0x10] sm:$0xf]
    %v494 = vld [vmem:[#allocation2 + $0x14] sm:$0xf]
    %v495 = vld [vmem:[#allocation2 + $0x18] sm:$0xf]
    %v496 = vld [vmem:[#allocation2 + $0x1c] sm:$0xf]
    %v497 = vld [vmem:[#allocation2 + $0x20] sm:$0xf]
    %v498 = vld [vmem:[#allocation2 + $0x24] sm:$0xf]
    %v499 = vld [vmem:[#allocation2 + $0x28] sm:$0xf]
    %v500 = vld [vmem:[#allocation2 + $0x2c] sm:$0xf]
    %v501 = vld [vmem:[#allocation2 + $0x30] sm:$0xf]
    %v502 = vld [vmem:[#allocation2 + $0x34] sm:$0xf]
    %v503 = vld [vmem:[#allocation2 + $0x38] sm:$0xf]
    %v504 = vld [vmem:[#allocation2 + $0x3c] sm:$0xf]
    %v521 = vunpack.c.l.b16 %v473
    %v522 = vunpack.c.l.b16 %v474
    %v523 = vunpack.c.l.b16 %v475
    %v524 = vunpack.c.l.b16 %v476
    %v525 = vunpack.c.l.b16 %v477
    %v526 = vunpack.c.l.b16 %v478
    %v527 = vunpack.c.l.b16 %v479
    %v528 = vunpack.c.l.b16 %v480
    %v529 = vunpack.c.l.b16 %v481
    %v530 = vunpack.c.l.b16 %v482
    %v531 = vunpack.c.l.b16 %v483
    %v532 = vunpack.c.l.b16 %v484
    %v533 = vunpack.c.l.b16 %v485
    %v534 = vunpack.c.l.b16 %v486
    %v535 = vunpack.c.l.b16 %v487
    %v536 = vunpack.c.l.b16 %v488
    %v537 = vpack.c.b16 %v522, %v521
    %v538 = vpack.c.b16 %v524, %v523
    %v539 = vpack.c.b16 %v526, %v525
    %v540 = vpack.c.b16 %v528, %v527
    %v541 = vpack.c.b16 %v530, %v529
    %v542 = vpack.c.b16 %v532, %v531
    %v543 = vpack.c.b16 %v534, %v533
    %v544 = vpack.c.b16 %v536, %v535
    %v569 = vunpack.c.l.b16 %v489
    %v570 = vunpack.c.l.b16 %v490
    %v571 = vunpack.c.l.b16 %v491
    %v572 = vunpack.c.l.b16 %v492
    %v573 = vunpack.c.l.b16 %v493
    %v574 = vunpack.c.l.b16 %v494
    %v575 = vunpack.c.l.b16 %v495
    %v576 = vunpack.c.l.b16 %v496
    %v577 = vunpack.c.l.b16 %v497
    %v578 = vunpack.c.l.b16 %v498
    %v579 = vunpack.c.l.b16 %v499
    %v580 = vunpack.c.l.b16 %v500
    %v581 = vunpack.c.l.b16 %v501
    %v582 = vunpack.c.l.b16 %v502
    %v583 = vunpack.c.l.b16 %v503
    %v584 = vunpack.c.l.b16 %v504
    %v585 = vpack.c.b16 %v570, %v569
    %v586 = vpack.c.b16 %v572, %v571
    %v587 = vpack.c.b16 %v574, %v573
    %v588 = vpack.c.b16 %v576, %v575
    %v589 = vpack.c.b16 %v578, %v577
    %v590 = vpack.c.b16 %v580, %v579
    %v591 = vpack.c.b16 %v582, %v581
    %v592 = vpack.c.b16 %v584, %v583
    %601 = vmatpush.bf16.msra.mxu0 %v592
    %602 = vmatpush.bf16.msra.mxu0 %v591
    %603 = vmatpush.bf16.msra.mxu0 %v590
    %604 = vmatpush.bf16.msra.mxu0 %v589
    %605 = vmatpush.bf16.msra.mxu0 %v588
    %606 = vmatpush.bf16.msra.mxu0 %v587
    %607 = vmatpush.bf16.msra.mxu0 %v586
    %608 = vmatpush.bf16.msra.mxu0 %v585
    %609 = vmatmul.bf16.gmra.mxu0 %v537
    %v610 = vpop.f32.mrf.mxu0
    %v611 = vadd.f32 0.0, %v610
    %v612 = vpop.f32.mrf.mxu0
    %v613 = vadd.f32 0.0, %v612
    %614 = vmatmul.bf16.gmra.mxu0 %v538
    %v615 = vpop.f32.mrf.mxu0
    %v616 = vadd.f32 0.0, %v615
    %v617 = vpop.f32.mrf.mxu0
    %v618 = vadd.f32 0.0, %v617
    %619 = vmatmul.bf16.gmra.mxu0 %v539
    %v620 = vpop.f32.mrf.mxu0
    %v621 = vadd.f32 0.0, %v620
    %v622 = vpop.f32.mrf.mxu0
    %v623 = vadd.f32 0.0, %v622
    %624 = vmatmul.bf16.gmra.mxu0 %v540
    %v625 = vpop.f32.mrf.mxu0
    %v626 = vadd.f32 0.0, %v625
    %v627 = vpop.f32.mrf.mxu0
    %v628 = vadd.f32 0.0, %v627
    %629 = vmatmul.bf16.gmra.mxu0 %v541
    %v630 = vpop.f32.mrf.mxu0
    %v631 = vadd.f32 0.0, %v630
    %v632 = vpop.f32.mrf.mxu0
    %v633 = vadd.f32 0.0, %v632
    %634 = vmatmul.bf16.gmra.mxu0 %v542
    %v635 = vpop.f32.mrf.mxu0
    %v636 = vadd.f32 0.0, %v635
    %v637 = vpop.f32.mrf.mxu0
    %v638 = vadd.f32 0.0, %v637
    %639 = vmatmul.bf16.gmra.mxu0 %v543
    %v640 = vpop.f32.mrf.mxu0
    %v641 = vadd.f32 0.0, %v640
    %v642 = vpop.f32.mrf.mxu0
    %v643 = vadd.f32 0.0, %v642
    %644 = vmatmul.bf16.gmra.mxu0 %v544
    %v645 = vpop.f32.mrf.mxu0
    %v646 = vadd.f32 0.0, %v645
    %v647 = vpop.f32.mrf.mxu0
    %v648 = vadd.f32 0.0, %v647
    %649 = vdwg.mxu0
    %v650 = vld [vmem:[#allocation3] sm:$0xff]
    %v651 = vld [vmem:[#allocation3 + $0x8] sm:$0xff]
    %v652 = vld [vmem:[#allocation3 + $0x10] sm:$0xff]
    %v653 = vld [vmem:[#allocation3 + $0x18] sm:$0xff]
    %v654 = vld [vmem:[#allocation3 + $0x20] sm:$0xff]
    %v655 = vld [vmem:[#allocation3 + $0x28] sm:$0xff]
    %v656 = vld [vmem:[#allocation3 + $0x30] sm:$0xff]
    %v657 = vld [vmem:[#allocation3 + $0x38] sm:$0xff]
    %v658 = vld [vmem:[#allocation3 + $0x40] sm:$0xff]
    %v659 = vld [vmem:[#allocation3 + $0x48] sm:$0xff]
    %v660 = vld [vmem:[#allocation3 + $0x50] sm:$0xff]
    %v661 = vld [vmem:[#allocation3 + $0x58] sm:$0xff]
    %v662 = vld [vmem:[#allocation3 + $0x60] sm:$0xff]
    %v663 = vld [vmem:[#allocation3 + $0x68] sm:$0xff]
    %v664 = vld [vmem:[#allocation3 + $0x70] sm:$0xff]
    %v665 = vld [vmem:[#allocation3 + $0x78] sm:$0xff]
    %v666 = vadd.f32 %v650, %v611
    %v667 = vadd.f32 %v651, %v613
    %v668 = vadd.f32 %v652, %v616
    %v669 = vadd.f32 %v653, %v618
    %v670 = vadd.f32 %v654, %v621
    %v671 = vadd.f32 %v655, %v623
    %v672 = vadd.f32 %v656, %v626
    %v673 = vadd.f32 %v657, %v628
    %v674 = vadd.f32 %v658, %v631
    %v675 = vadd.f32 %v659, %v633
    %v676 = vadd.f32 %v660, %v636
    %v677 = vadd.f32 %v661, %v638
    %v678 = vadd.f32 %v662, %v641
    %v679 = vadd.f32 %v663, %v643
    %v680 = vadd.f32 %v664, %v646
    %v681 = vadd.f32 %v665, %v648
    %682 = vst [vmem:[#allocation3] sm:$0xff] %v666
    %683 = vst [vmem:[#allocation3 + $0x8] sm:$0xff] %v667
    %684 = vst [vmem:[#allocation3 + $0x10] sm:$0xff] %v668
    %685 = vst [vmem:[#allocation3 + $0x18] sm:$0xff] %v669
    %686 = vst [vmem:[#allocation3 + $0x20] sm:$0xff] %v670
    %687 = vst [vmem:[#allocation3 + $0x28] sm:$0xff] %v671
    %688 = vst [vmem:[#allocation3 + $0x30] sm:$0xff] %v672
    %689 = vst [vmem:[#allocation3 + $0x38] sm:$0xff] %v673
    %690 = vst [vmem:[#allocation3 + $0x40] sm:$0xff] %v674
    %691 = vst [vmem:[#allocation3 + $0x48] sm:$0xff] %v675
    %692 = vst [vmem:[#allocation3 + $0x50] sm:$0xff] %v676
    %693 = vst [vmem:[#allocation3 + $0x58] sm:$0xff] %v677
    %694 = vst [vmem:[#allocation3 + $0x60] sm:$0xff] %v678
    %695 = vst [vmem:[#allocation3 + $0x68] sm:$0xff] %v679
    %696 = vst [vmem:[#allocation3 + $0x70] sm:$0xff] %v680
    %697 = vst [vmem:[#allocation3 + $0x78] sm:$0xff] %v681
    %v698 = vpack.c.bf16 %v611, %v611
    %v699 = vpack.c.bf16 %v613, %v613
    %v700 = vpack.c.bf16 %v616, %v616
    %v701 = vpack.c.bf16 %v618, %v618
    %v702 = vpack.c.bf16 %v621, %v621
    %v703 = vpack.c.bf16 %v623, %v623
    %v704 = vpack.c.bf16 %v626, %v626
    %v705 = vpack.c.bf16 %v628, %v628
    %v706 = vpack.c.bf16 %v631, %v631
    %v707 = vpack.c.bf16 %v633, %v633
    %v708 = vpack.c.bf16 %v636, %v636
    %v709 = vpack.c.bf16 %v638, %v638
    %v710 = vpack.c.bf16 %v641, %v641
    %v711 = vpack.c.bf16 %v643, %v643
    %v712 = vpack.c.bf16 %v646, %v646
    %v713 = vpack.c.bf16 %v648, %v648
    %714 = vst [vmem:[#allocation2] sm:$0xf] %v698
    %715 = vst [vmem:[#allocation2 + $0x4] sm:$0xf] %v699
    %716 = vst [vmem:[#allocation2 + $0x8] sm:$0xf] %v700
    %717 = vst [vmem:[#allocation2 + $0xc] sm:$0xf] %v701
    %718 = vst [vmem:[#allocation2 + $0x10] sm:$0xf] %v702
    %719 = vst [vmem:[#allocation2 + $0x14] sm:$0xf] %v703
    %720 = vst [vmem:[#allocation2 + $0x18] sm:$0xf] %v704
    %721 = vst [vmem:[#allocation2 + $0x1c] sm:$0xf] %v705
    %722 = vst [vmem:[#allocation2 + $0x20] sm:$0xf] %v706
    %723 = vst [vmem:[#allocation2 + $0x24] sm:$0xf] %v707
    %724 = vst [vmem:[#allocation2 + $0x28] sm:$0xf] %v708
    %725 = vst [vmem:[#allocation2 + $0x2c] sm:$0xf] %v709
    %726 = vst [vmem:[#allocation2 + $0x30] sm:$0xf] %v710
    %727 = vst [vmem:[#allocation2 + $0x34] sm:$0xf] %v711
    %728 = vst [vmem:[#allocation2 + $0x38] sm:$0xf] %v712
    %729 = vst [vmem:[#allocation2 + $0x3c] sm:$0xf] %v713
    %v730 = vld [vmem:[%s0] sm:$0xf]
    %v731 = vld [vmem:[%s0 + $0x4] sm:$0xf]
    %v732 = vld [vmem:[%s0 + $0x8] sm:$0xf]
    %v733 = vld [vmem:[%s0 + $0xc] sm:$0xf]
    %v734 = vld [vmem:[%s0 + $0x10] sm:$0xf]
    %v735 = vld [vmem:[%s0 + $0x14] sm:$0xf]
    %v736 = vld [vmem:[%s0 + $0x18] sm:$0xf]
    %v737 = vld [vmem:[%s0 + $0x1c] sm:$0xf]
    %v738 = vld [vmem:[%s0 + $0x20] sm:$0xf]
    %v739 = vld [vmem:[%s0 + $0x24] sm:$0xf]
    %v740 = vld [vmem:[%s0 + $0x28] sm:$0xf]
    %v741 = vld [vmem:[%s0 + $0x2c] sm:$0xf]
    %v742 = vld [vmem:[%s0 + $0x30] sm:$0xf]
    %v743 = vld [vmem:[%s0 + $0x34] sm:$0xf]
    %v744 = vld [vmem:[%s0 + $0x38] sm:$0xf]
    %v745 = vld [vmem:[%s0 + $0x3c] sm:$0xf]
    %v746 = vld [vmem:[#allocation2] sm:$0xf]
    %v747 = vld [vmem:[#allocation2 + $0x4] sm:$0xf]
    %v748 = vld [vmem:[#allocation2 + $0x8] sm:$0xf]
    %v749 = vld [vmem:[#allocation2 + $0xc] sm:$0xf]
    %v750 = vld [vmem:[#allocation2 + $0x10] sm:$0xf]
    %v751 = vld [vmem:[#allocation2 + $0x14] sm:$0xf]
    %v752 = vld [vmem:[#allocation2 + $0x18] sm:$0xf]
    %v753 = vld [vmem:[#allocation2 + $0x1c] sm:$0xf]
    %v754 = vld [vmem:[#allocation2 + $0x20] sm:$0xf]
    %v755 = vld [vmem:[#allocation2 + $0x24] sm:$0xf]
    %v756 = vld [vmem:[#allocation2 + $0x28] sm:$0xf]
    %v757 = vld [vmem:[#allocation2 + $0x2c] sm:$0xf]
    %v758 = vld [vmem:[#allocation2 + $0x30] sm:$0xf]
    %v759 = vld [vmem:[#allocation2 + $0x34] sm:$0xf]
    %v760 = vld [vmem:[#allocation2 + $0x38] sm:$0xf]
    %v761 = vld [vmem:[#allocation2 + $0x3c] sm:$0xf]
    %v778 = vunpack.c.l.b16 %v730
    %v779 = vunpack.c.l.b16 %v731
    %v780 = vunpack.c.l.b16 %v732
    %v781 = vunpack.c.l.b16 %v733
    %v782 = vunpack.c.l.b16 %v734
    %v783 = vunpack.c.l.b16 %v735
    %v784 = vunpack.c.l.b16 %v736
    %v785 = vunpack.c.l.b16 %v737
    %v786 = vunpack.c.l.b16 %v738
    %v787 = vunpack.c.l.b16 %v739
    %v788 = vunpack.c.l.b16 %v740
    %v789 = vunpack.c.l.b16 %v741
    %v790 = vunpack.c.l.b16 %v742
    %v791 = vunpack.c.l.b16 %v743
    %v792 = vunpack.c.l.b16 %v744
    %v793 = vunpack.c.l.b16 %v745
    %v794 = vpack.c.b16 %v779, %v778
    %v795 = vpack.c.b16 %v781, %v780
    %v796 = vpack.c.b16 %v783, %v782
    %v797 = vpack.c.b16 %v785, %v784
    %v798 = vpack.c.b16 %v787, %v786
    %v799 = vpack.c.b16 %v789, %v788
    %v800 = vpack.c.b16 %v791, %v790
    %v801 = vpack.c.b16 %v793, %v792
    %v826 = vunpack.c.l.b16 %v746
    %v827 = vunpack.c.l.b16 %v747
    %v828 = vunpack.c.l.b16 %v748
    %v829 = vunpack.c.l.b16 %v749
    %v830 = vunpack.c.l.b16 %v750
    %v831 = vunpack.c.l.b16 %v751
    %v832 = vunpack.c.l.b16 %v752
    %v833 = vunpack.c.l.b16 %v753
    %v834 = vunpack.c.l.b16 %v754
    %v835 = vunpack.c.l.b16 %v755
    %v836 = vunpack.c.l.b16 %v756
    %v837 = vunpack.c.l.b16 %v757
    %v838 = vunpack.c.l.b16 %v758
    %v839 = vunpack.c.l.b16 %v759
    %v840 = vunpack.c.l.b16 %v760
    %v841 = vunpack.c.l.b16 %v761
    %v842 = vpack.c.b16 %v827, %v826
    %v843 = vpack.c.b16 %v829, %v828
    %v844 = vpack.c.b16 %v831, %v830
    %v845 = vpack.c.b16 %v833, %v832
    %v846 = vpack.c.b16 %v835, %v834
    %v847 = vpack.c.b16 %v837, %v836
    %v848 = vpack.c.b16 %v839, %v838
    %v849 = vpack.c.b16 %v841, %v840
    %858 = vmatpush.bf16.msra.mxu0 %v849
    %859 = vmatpush.bf16.msra.mxu0 %v848
    %860 = vmatpush.bf16.msra.mxu0 %v847
    %861 = vmatpush.bf16.msra.mxu0 %v846
    %862 = vmatpush.bf16.msra.mxu0 %v845
    %863 = vmatpush.bf16.msra.mxu0 %v844
    %864 = vmatpush.bf16.msra.mxu0 %v843
    %865 = vmatpush.bf16.msra.mxu0 %v842
    %866 = vmatmul.bf16.gmra.mxu0 %v794
    %v867 = vpop.f32.mrf.mxu0
    %v868 = vadd.f32 0.0, %v867
    %v869 = vpop.f32.mrf.mxu0
    %v870 = vadd.f32 0.0, %v869
    %871 = vmatmul.bf16.gmra.mxu0 %v795
    %v872 = vpop.f32.mrf.mxu0
    %v873 = vadd.f32 0.0, %v872
    %v874 = vpop.f32.mrf.mxu0
    %v875 = vadd.f32 0.0, %v874
    %876 = vmatmul.bf16.gmra.mxu0 %v796
    %v877 = vpop.f32.mrf.mxu0
    %v878 = vadd.f32 0.0, %v877
    %v879 = vpop.f32.mrf.mxu0
    %v880 = vadd.f32 0.0, %v879
    %881 = vmatmul.bf16.gmra.mxu0 %v797
    %v882 = vpop.f32.mrf.mxu0
    %v883 = vadd.f32 0.0, %v882
    %v884 = vpop.f32.mrf.mxu0
    %v885 = vadd.f32 0.0, %v884
    %886 = vmatmul.bf16.gmra.mxu0 %v798
    %v887 = vpop.f32.mrf.mxu0
    %v888 = vadd.f32 0.0, %v887
    %v889 = vpop.f32.mrf.mxu0
    %v890 = vadd.f32 0.0, %v889
    %891 = vmatmul.bf16.gmra.mxu0 %v799
    %v892 = vpop.f32.mrf.mxu0
    %v893 = vadd.f32 0.0, %v892
    %v894 = vpop.f32.mrf.mxu0
    %v895 = vadd.f32 0.0, %v894
    %896 = vmatmul.bf16.gmra.mxu0 %v800
    %v897 = vpop.f32.mrf.mxu0
    %v898 = vadd.f32 0.0, %v897
    %v899 = vpop.f32.mrf.mxu0
    %v900 = vadd.f32 0.0, %v899
    %901 = vmatmul.bf16.gmra.mxu0 %v801
    %v902 = vpop.f32.mrf.mxu0
    %v903 = vadd.f32 0.0, %v902
    %v904 = vpop.f32.mrf.mxu0
    %v905 = vadd.f32 0.0, %v904
    %906 = vdwg.mxu0
    %v907 = vld [vmem:[#allocation3] sm:$0xff]
    %v908 = vld [vmem:[#allocation3 + $0x8] sm:$0xff]
    %v909 = vld [vmem:[#allocation3 + $0x10] sm:$0xff]
    %v910 = vld [vmem:[#allocation3 + $0x18] sm:$0xff]
    %v911 = vld [vmem:[#allocation3 + $0x20] sm:$0xff]
    %v912 = vld [vmem:[#allocation3 + $0x28] sm:$0xff]
    %v913 = vld [vmem:[#allocation3 + $0x30] sm:$0xff]
    %v914 = vld [vmem:[#allocation3 + $0x38] sm:$0xff]
    %v915 = vld [vmem:[#allocation3 + $0x40] sm:$0xff]
    %v916 = vld [vmem:[#allocation3 + $0x48] sm:$0xff]
    %v917 = vld [vmem:[#allocation3 + $0x50] sm:$0xff]
    %v918 = vld [vmem:[#allocation3 + $0x58] sm:$0xff]
    %v919 = vld [vmem:[#allocation3 + $0x60] sm:$0xff]
    %v920 = vld [vmem:[#allocation3 + $0x68] sm:$0xff]
    %v921 = vld [vmem:[#allocation3 + $0x70] sm:$0xff]
    %v922 = vld [vmem:[#allocation3 + $0x78] sm:$0xff]
    %v923 = vadd.f32 %v907, %v868
    %v924 = vadd.f32 %v908, %v870
    %v925 = vadd.f32 %v909, %v873
    %v926 = vadd.f32 %v910, %v875
    %v927 = vadd.f32 %v911, %v878
    %v928 = vadd.f32 %v912, %v880
    %v929 = vadd.f32 %v913, %v883
    %v930 = vadd.f32 %v914, %v885
    %v931 = vadd.f32 %v915, %v888
    %v932 = vadd.f32 %v916, %v890
    %v933 = vadd.f32 %v917, %v893
    %v934 = vadd.f32 %v918, %v895
    %v935 = vadd.f32 %v919, %v898
    %v936 = vadd.f32 %v920, %v900
    %v937 = vadd.f32 %v921, %v903
    %v938 = vadd.f32 %v922, %v905
    %939 = vst [vmem:[#allocation3] sm:$0xff] %v923
    %940 = vst [vmem:[#allocation3 + $0x8] sm:$0xff] %v924
    %941 = vst [vmem:[#allocation3 + $0x10] sm:$0xff] %v925
    %942 = vst [vmem:[#allocation3 + $0x18] sm:$0xff] %v926
    %943 = vst [vmem:[#allocation3 + $0x20] sm:$0xff] %v927
    %944 = vst [vmem:[#allocation3 + $0x28] sm:$0xff] %v928
    %945 = vst [vmem:[#allocation3 + $0x30] sm:$0xff] %v929
    %946 = vst [vmem:[#allocation3 + $0x38] sm:$0xff] %v930
    %947 = vst [vmem:[#allocation3 + $0x40] sm:$0xff] %v931
    %948 = vst [vmem:[#allocation3 + $0x48] sm:$0xff] %v932
    %949 = vst [vmem:[#allocation3 + $0x50] sm:$0xff] %v933
    %950 = vst [vmem:[#allocation3 + $0x58] sm:$0xff] %v934
    %951 = vst [vmem:[#allocation3 + $0x60] sm:$0xff] %v935
    %952 = vst [vmem:[#allocation3 + $0x68] sm:$0xff] %v936
    %953 = vst [vmem:[#allocation3 + $0x70] sm:$0xff] %v937
    %954 = vst [vmem:[#allocation3 + $0x78] sm:$0xff] %v938
    %v955 = vpack.c.bf16 %v868, %v868
    %v956 = vpack.c.bf16 %v870, %v870
    %v957 = vpack.c.bf16 %v873, %v873
    %v958 = vpack.c.bf16 %v875, %v875
    %v959 = vpack.c.bf16 %v878, %v878
    %v960 = vpack.c.bf16 %v880, %v880
    %v961 = vpack.c.bf16 %v883, %v883
    %v962 = vpack.c.bf16 %v885, %v885
    %v963 = vpack.c.bf16 %v888, %v888
    %v964 = vpack.c.bf16 %v890, %v890
    %v965 = vpack.c.bf16 %v893, %v893
    %v966 = vpack.c.bf16 %v895, %v895
    %v967 = vpack.c.bf16 %v898, %v898
    %v968 = vpack.c.bf16 %v900, %v900
    %v969 = vpack.c.bf16 %v903, %v903
    %v970 = vpack.c.bf16 %v905, %v905
    %971 = vst [vmem:[#allocation2] sm:$0xf] %v955
    %972 = vst [vmem:[#allocation2 + $0x4] sm:$0xf] %v956
    %973 = vst [vmem:[#allocation2 + $0x8] sm:$0xf] %v957
    %974 = vst [vmem:[#allocation2 + $0xc] sm:$0xf] %v958
    %975 = vst [vmem:[#allocation2 + $0x10] sm:$0xf] %v959
    %976 = vst [vmem:[#allocation2 + $0x14] sm:$0xf] %v960
    %977 = vst [vmem:[#allocation2 + $0x18] sm:$0xf] %v961
    %978 = vst [vmem:[#allocation2 + $0x1c] sm:$0xf] %v962
    %979 = vst [vmem:[#allocation2 + $0x20] sm:$0xf] %v963
    %980 = vst [vmem:[#allocation2 + $0x24] sm:$0xf] %v964
    %981 = vst [vmem:[#allocation2 + $0x28] sm:$0xf] %v965
    %982 = vst [vmem:[#allocation2 + $0x2c] sm:$0xf] %v966
    %983 = vst [vmem:[#allocation2 + $0x30] sm:$0xf] %v967
    %984 = vst [vmem:[#allocation2 + $0x34] sm:$0xf] %v968
    %985 = vst [vmem:[#allocation2 + $0x38] sm:$0xf] %v969
    %986 = vst [vmem:[#allocation2 + $0x3c] sm:$0xf] %v970
    %v987 = vld [vmem:[%s0] sm:$0xf]
    %v988 = vld [vmem:[%s0 + $0x4] sm:$0xf]
    %v989 = vld [vmem:[%s0 + $0x8] sm:$0xf]
    %v990 = vld [vmem:[%s0 + $0xc] sm:$0xf]
    %v991 = vld [vmem:[%s0 + $0x10] sm:$0xf]
    %v992 = vld [vmem:[%s0 + $0x14] sm:$0xf]
    %v993 = vld [vmem:[%s0 + $0x18] sm:$0xf]
    %v994 = vld [vmem:[%s0 + $0x1c] sm:$0xf]
    %v995 = vld [vmem:[%s0 + $0x20] sm:$0xf]
    %v996 = vld [vmem:[%s0 + $0x24] sm:$0xf]
    %v997 = vld [vmem:[%s0 + $0x28] sm:$0xf]
    %v998 = vld [vmem:[%s0 + $0x2c] sm:$0xf]
    %v999 = vld [vmem:[%s0 + $0x30] sm:$0xf]
    %v1000 = vld [vmem:[%s0 + $0x34] sm:$0xf]
    %v1001 = vld [vmem:[%s0 + $0x38] sm:$0xf]
    %v1002 = vld [vmem:[%s0 + $0x3c] sm:$0xf]
    %v1003 = vld [vmem:[#allocation2] sm:$0xf]
    %v1004 = vld [vmem:[#allocation2 + $0x4] sm:$0xf]
    %v1005 = vld [vmem:[#allocation2 + $0x8] sm:$0xf]
    %v1006 = vld [vmem:[#allocation2 + $0xc] sm:$0xf]
    %v1007 = vld [vmem:[#allocation2 + $0x10] sm:$0xf]
    %v1008 = vld [vmem:[#allocation2 + $0x14] sm:$0xf]
    %v1009 = vld [vmem:[#allocation2 + $0x18] sm:$0xf]
    %v1010 = vld [vmem:[#allocation2 + $0x1c] sm:$0xf]
    %v1011 = vld [vmem:[#allocation2 + $0x20] sm:$0xf]
    %v1012 = vld [vmem:[#allocation2 + $0x24] sm:$0xf]
    %v1013 = vld [vmem:[#allocation2 + $0x28] sm:$0xf]
    %v1014 = vld [vmem:[#allocation2 + $0x2c] sm:$0xf]
    %v1015 = vld [vmem:[#allocation2 + $0x30] sm:$0xf]
    %v1016 = vld [vmem:[#allocation2 + $0x34] sm:$0xf]
    %v1017 = vld [vmem:[#allocation2 + $0x38] sm:$0xf]
    %v1018 = vld [vmem:[#allocation2 + $0x3c] sm:$0xf]
    %v1035 = vunpack.c.l.b16 %v987
    %v1036 = vunpack.c.l.b16 %v988
    %v1037 = vunpack.c.l.b16 %v989
    %v1038 = vunpack.c.l.b16 %v990
    %v1039 = vunpack.c.l.b16 %v991
    %v1040 = vunpack.c.l.b16 %v992
    %v1041 = vunpack.c.l.b16 %v993
    %v1042 = vunpack.c.l.b16 %v994
    %v1043 = vunpack.c.l.b16 %v995
    %v1044 = vunpack.c.l.b16 %v996
    %v1045 = vunpack.c.l.b16 %v997
    %v1046 = vunpack.c.l.b16 %v998
    %v1047 = vunpack.c.l.b16 %v999
    %v1048 = vunpack.c.l.b16 %v1000
    %v1049 = vunpack.c.l.b16 %v1001
    %v1050 = vunpack.c.l.b16 %v1002
    %v1051 = vpack.c.b16 %v1036, %v1035
    %v1052 = vpack.c.b16 %v1038, %v1037
    %v1053 = vpack.c.b16 %v1040, %v1039
    %v1054 = vpack.c.b16 %v1042, %v1041
    %v1055 = vpack.c.b16 %v1044, %v1043
    %v1056 = vpack.c.b16 %v1046, %v1045
    %v1057 = vpack.c.b16 %v1048, %v1047
    %v1058 = vpack.c.b16 %v1050, %v1049
    %v1083 = vunpack.c.l.b16 %v1003
    %v1084 = vunpack.c.l.b16 %v1004
    %v1085 = vunpack.c.l.b16 %v1005
    %v1086 = vunpack.c.l.b16 %v1006
    %v1087 = vunpack.c.l.b16 %v1007
    %v1088 = vunpack.c.l.b16 %v1008
    %v1089 = vunpack.c.l.b16 %v1009
    %v1090 = vunpack.c.l.b16 %v1010
    %v1091 = vunpack.c.l.b16 %v1011
    %v1092 = vunpack.c.l.b16 %v1012
    %v1093 = vunpack.c.l.b16 %v1013
    %v1094 = vunpack.c.l.b16 %v1014
    %v1095 = vunpack.c.l.b16 %v1015
    %v1096 = vunpack.c.l.b16 %v1016
    %v1097 = vunpack.c.l.b16 %v1017
    %v1098 = vunpack.c.l.b16 %v1018
    %v1099 = vpack.c.b16 %v1084, %v1083
    %v1100 = vpack.c.b16 %v1086, %v1085
    %v1101 = vpack.c.b16 %v1088, %v1087
    %v1102 = vpack.c.b16 %v1090, %v1089
    %v1103 = vpack.c.b16 %v1092, %v1091
    %v1104 = vpack.c.b16 %v1094, %v1093
    %v1105 = vpack.c.b16 %v1096, %v1095
    %v1106 = vpack.c.b16 %v1098, %v1097
    %1115 = vmatpush.bf16.msra.mxu0 %v1106
    %1116 = vmatpush.bf16.msra.mxu0 %v1105
    %1117 = vmatpush.bf16.msra.mxu0 %v1104
    %1118 = vmatpush.bf16.msra.mxu0 %v1103
    %1119 = vmatpush.bf16.msra.mxu0 %v1102
    %1120 = vmatpush.bf16.msra.mxu0 %v1101
    %1121 = vmatpush.bf16.msra.mxu0 %v1100
    %1122 = vmatpush.bf16.msra.mxu0 %v1099
    %1123 = vmatmul.bf16.gmra.mxu0 %v1051
    %v1124 = vpop.f32.mrf.mxu0
    %v1125 = vadd.f32 0.0, %v1124
    %v1126 = vpop.f32.mrf.mxu0
    %v1127 = vadd.f32 0.0, %v1126
    %1128 = vmatmul.bf16.gmra.mxu0 %v1052
    %v1129 = vpop.f32.mrf.mxu0
    %v1130 = vadd.f32 0.0, %v1129
    %v1131 = vpop.f32.mrf.mxu0
    %v1132 = vadd.f32 0.0, %v1131
    %1133 = vmatmul.bf16.gmra.mxu0 %v1053
    %v1134 = vpop.f32.mrf.mxu0
    %v1135 = vadd.f32 0.0, %v1134
    %v1136 = vpop.f32.mrf.mxu0
    %v1137 = vadd.f32 0.0, %v1136
    %1138 = vmatmul.bf16.gmra.mxu0 %v1054
    %v1139 = vpop.f32.mrf.mxu0
    %v1140 = vadd.f32 0.0, %v1139
    %v1141 = vpop.f32.mrf.mxu0
    %v1142 = vadd.f32 0.0, %v1141
    %1143 = vmatmul.bf16.gmra.mxu0 %v1055
    %v1144 = vpop.f32.mrf.mxu0
    %v1145 = vadd.f32 0.0, %v1144
    %v1146 = vpop.f32.mrf.mxu0
    %v1147 = vadd.f32 0.0, %v1146
    %1148 = vmatmul.bf16.gmra.mxu0 %v1056
    %v1149 = vpop.f32.mrf.mxu0
    %v1150 = vadd.f32 0.0, %v1149
    %v1151 = vpop.f32.mrf.mxu0
    %v1152 = vadd.f32 0.0, %v1151
    %1153 = vmatmul.bf16.gmra.mxu0 %v1057
    %v1154 = vpop.f32.mrf.mxu0
    %v1155 = vadd.f32 0.0, %v1154
    %v1156 = vpop.f32.mrf.mxu0
    %v1157 = vadd.f32 0.0, %v1156
    %1158 = vmatmul.bf16.gmra.mxu0 %v1058
    %v1159 = vpop.f32.mrf.mxu0
    %v1160 = vadd.f32 0.0, %v1159
    %v1161 = vpop.f32.mrf.mxu0
    %v1162 = vadd.f32 0.0, %v1161
    %1163 = vdwg.mxu0
    %v1164 = vld [vmem:[#allocation3] sm:$0xff]
    %v1165 = vld [vmem:[#allocation3 + $0x8] sm:$0xff]
    %v1166 = vld [vmem:[#allocation3 + $0x10] sm:$0xff]
    %v1167 = vld [vmem:[#allocation3 + $0x18] sm:$0xff]
    %v1168 = vld [vmem:[#allocation3 + $0x20] sm:$0xff]
    %v1169 = vld [vmem:[#allocation3 + $0x28] sm:$0xff]
    %v1170 = vld [vmem:[#allocation3 + $0x30] sm:$0xff]
    %v1171 = vld [vmem:[#allocation3 + $0x38] sm:$0xff]
    %v1172 = vld [vmem:[#allocation3 + $0x40] sm:$0xff]
    %v1173 = vld [vmem:[#allocation3 + $0x48] sm:$0xff]
    %v1174 = vld [vmem:[#allocation3 + $0x50] sm:$0xff]
    %v1175 = vld [vmem:[#allocation3 + $0x58] sm:$0xff]
    %v1176 = vld [vmem:[#allocation3 + $0x60] sm:$0xff]
    %v1177 = vld [vmem:[#allocation3 + $0x68] sm:$0xff]
    %v1178 = vld [vmem:[#allocation3 + $0x70] sm:$0xff]
    %v1179 = vld [vmem:[#allocation3 + $0x78] sm:$0xff]
    %v1180 = vadd.f32 %v1164, %v1125
    %v1181 = vadd.f32 %v1165, %v1127
    %v1182 = vadd.f32 %v1166, %v1130
    %v1183 = vadd.f32 %v1167, %v1132
    %v1184 = vadd.f32 %v1168, %v1135
    %v1185 = vadd.f32 %v1169, %v1137
    %v1186 = vadd.f32 %v1170, %v1140
    %v1187 = vadd.f32 %v1171, %v1142
    %v1188 = vadd.f32 %v1172, %v1145
    %v1189 = vadd.f32 %v1173, %v1147
    %v1190 = vadd.f32 %v1174, %v1150
    %v1191 = vadd.f32 %v1175, %v1152
    %v1192 = vadd.f32 %v1176, %v1155
    %v1193 = vadd.f32 %v1177, %v1157
    %v1194 = vadd.f32 %v1178, %v1160
    %v1195 = vadd.f32 %v1179, %v1162
    %1196 = vst [vmem:[#allocation3] sm:$0xff] %v1180
    %1197 = vst [vmem:[#allocation3 + $0x8] sm:$0xff] %v1181
    %1198 = vst [vmem:[#allocation3 + $0x10] sm:$0xff] %v1182
    %1199 = vst [vmem:[#allocation3 + $0x18] sm:$0xff] %v1183
    %1200 = vst [vmem:[#allocation3 + $0x20] sm:$0xff] %v1184
    %1201 = vst [vmem:[#allocation3 + $0x28] sm:$0xff] %v1185
    %1202 = vst [vmem:[#allocation3 + $0x30] sm:$0xff] %v1186
    %1203 = vst [vmem:[#allocation3 + $0x38] sm:$0xff] %v1187
    %1204 = vst [vmem:[#allocation3 + $0x40] sm:$0xff] %v1188
    %1205 = vst [vmem:[#allocation3 + $0x48] sm:$0xff] %v1189
    %1206 = vst [vmem:[#allocation3 + $0x50] sm:$0xff] %v1190
    %1207 = vst [vmem:[#allocation3 + $0x58] sm:$0xff] %v1191
    %1208 = vst [vmem:[#allocation3 + $0x60] sm:$0xff] %v1192
    %1209 = vst [vmem:[#allocation3 + $0x68] sm:$0xff] %v1193
    %1210 = vst [vmem:[#allocation3 + $0x70] sm:$0xff] %v1194
    %1211 = vst [vmem:[#allocation3 + $0x78] sm:$0xff] %v1195
    %v1212 = vpack.c.bf16 %v1125, %v1125
    %v1213 = vpack.c.bf16 %v1127, %v1127
    %v1214 = vpack.c.bf16 %v1130, %v1130
    %v1215 = vpack.c.bf16 %v1132, %v1132
    %v1216 = vpack.c.bf16 %v1135, %v1135
    %v1217 = vpack.c.bf16 %v1137, %v1137
    %v1218 = vpack.c.bf16 %v1140, %v1140
    %v1219 = vpack.c.bf16 %v1142, %v1142
    %v1220 = vpack.c.bf16 %v1145, %v1145
    %v1221 = vpack.c.bf16 %v1147, %v1147
    %v1222 = vpack.c.bf16 %v1150, %v1150
    %v1223 = vpack.c.bf16 %v1152, %v1152
    %v1224 = vpack.c.bf16 %v1155, %v1155
    %v1225 = vpack.c.bf16 %v1157, %v1157
    %v1226 = vpack.c.bf16 %v1160, %v1160
    %v1227 = vpack.c.bf16 %v1162, %v1162
    %1228 = vst [vmem:[#allocation2] sm:$0xf] %v1212
    %1229 = vst [vmem:[#allocation2 + $0x4] sm:$0xf] %v1213
    %1230 = vst [vmem:[#allocation2 + $0x8] sm:$0xf] %v1214
    %1231 = vst [vmem:[#allocation2 + $0xc] sm:$0xf] %v1215
    %1232 = vst [vmem:[#allocation2 + $0x10] sm:$0xf] %v1216
    %1233 = vst [vmem:[#allocation2 + $0x14] sm:$0xf] %v1217
    %1234 = vst [vmem:[#allocation2 + $0x18] sm:$0xf] %v1218
    %1235 = vst [vmem:[#allocation2 + $0x1c] sm:$0xf] %v1219
    %1236 = vst [vmem:[#allocation2 + $0x20] sm:$0xf] %v1220
    %1237 = vst [vmem:[#allocation2 + $0x24] sm:$0xf] %v1221
    %1238 = vst [vmem:[#allocation2 + $0x28] sm:$0xf] %v1222
    %1239 = vst [vmem:[#allocation2 + $0x2c] sm:$0xf] %v1223
    %1240 = vst [vmem:[#allocation2 + $0x30] sm:$0xf] %v1224
    %1241 = vst [vmem:[#allocation2 + $0x34] sm:$0xf] %v1225
    %1242 = vst [vmem:[#allocation2 + $0x38] sm:$0xf] %v1226
    %1243 = vst [vmem:[#allocation2 + $0x3c] sm:$0xf] %v1227
    %v1244 = vld [vmem:[%s0] sm:$0xf]
    %v1245 = vld [vmem:[%s0 + $0x4] sm:$0xf]
    %v1246 = vld [vmem:[%s0 + $0x8] sm:$0xf]
    %v1247 = vld [vmem:[%s0 + $0xc] sm:$0xf]
    %v1248 = vld [vmem:[%s0 + $0x10] sm:$0xf]
    %v1249 = vld [vmem:[%s0 + $0x14] sm:$0xf]
    %v1250 = vld [vmem:[%s0 + $0x18] sm:$0xf]
    %v1251 = vld [vmem:[%s0 + $0x1c] sm:$0xf]
    %v1252 = vld [vmem:[%s0 + $0x20] sm:$0xf]
    %v1253 = vld [vmem:[%s0 + $0x24] sm:$0xf]
    %v1254 = vld [vmem:[%s0 + $0x28] sm:$0xf]
    %v1255 = vld [vmem:[%s0 + $0x2c] sm:$0xf]
    %v1256 = vld [vmem:[%s0 + $0x30] sm:$0xf]
    %v1257 = vld [vmem:[%s0 + $0x34] sm:$0xf]
    %v1258 = vld [vmem:[%s0 + $0x38] sm:$0xf]
    %v1259 = vld [vmem:[%s0 + $0x3c] sm:$0xf]
    %v1260 = vld [vmem:[#allocation2] sm:$0xf]
    %v1261 = vld [vmem:[#allocation2 + $0x4] sm:$0xf]
    %v1262 = vld [vmem:[#allocation2 + $0x8] sm:$0xf]
    %v1263 = vld [vmem:[#allocation2 + $0xc] sm:$0xf]
    %v1264 = vld [vmem:[#allocation2 + $0x10] sm:$0xf]
    %v1265 = vld [vmem:[#allocation2 + $0x14] sm:$0xf]
    %v1266 = vld [vmem:[#allocation2 + $0x18] sm:$0xf]
    %v1267 = vld [vmem:[#allocation2 + $0x1c] sm:$0xf]
    %v1268 = vld [vmem:[#allocation2 + $0x20] sm:$0xf]
    %v1269 = vld [vmem:[#allocation2 + $0x24] sm:$0xf]
    %v1270 = vld [vmem:[#allocation2 + $0x28] sm:$0xf]
    %v1271 = vld [vmem:[#allocation2 + $0x2c] sm:$0xf]
    %v1272 = vld [vmem:[#allocation2 + $0x30] sm:$0xf]
    %v1273 = vld [vmem:[#allocation2 + $0x34] sm:$0xf]
    %v1274 = vld [vmem:[#allocation2 + $0x38] sm:$0xf]
    %v1275 = vld [vmem:[#allocation2 + $0x3c] sm:$0xf]
    %v1292 = vunpack.c.l.b16 %v1244
    %v1293 = vunpack.c.l.b16 %v1245
    %v1294 = vunpack.c.l.b16 %v1246
    %v1295 = vunpack.c.l.b16 %v1247
    %v1296 = vunpack.c.l.b16 %v1248
    %v1297 = vunpack.c.l.b16 %v1249
    %v1298 = vunpack.c.l.b16 %v1250
    %v1299 = vunpack.c.l.b16 %v1251
    %v1300 = vunpack.c.l.b16 %v1252
    %v1301 = vunpack.c.l.b16 %v1253
    %v1302 = vunpack.c.l.b16 %v1254
    %v1303 = vunpack.c.l.b16 %v1255
    %v1304 = vunpack.c.l.b16 %v1256
    %v1305 = vunpack.c.l.b16 %v1257
    %v1306 = vunpack.c.l.b16 %v1258
    %v1307 = vunpack.c.l.b16 %v1259
    %v1308 = vpack.c.b16 %v1293, %v1292
    %v1309 = vpack.c.b16 %v1295, %v1294
    %v1310 = vpack.c.b16 %v1297, %v1296
    %v1311 = vpack.c.b16 %v1299, %v1298
    %v1312 = vpack.c.b16 %v1301, %v1300
    %v1313 = vpack.c.b16 %v1303, %v1302
    %v1314 = vpack.c.b16 %v1305, %v1304
    %v1315 = vpack.c.b16 %v1307, %v1306
    %v1340 = vunpack.c.l.b16 %v1260
    %v1341 = vunpack.c.l.b16 %v1261
    %v1342 = vunpack.c.l.b16 %v1262
    %v1343 = vunpack.c.l.b16 %v1263
    %v1344 = vunpack.c.l.b16 %v1264
    %v1345 = vunpack.c.l.b16 %v1265
    %v1346 = vunpack.c.l.b16 %v1266
    %v1347 = vunpack.c.l.b16 %v1267
    %v1348 = vunpack.c.l.b16 %v1268
    %v1349 = vunpack.c.l.b16 %v1269
    %v1350 = vunpack.c.l.b16 %v1270
    %v1351 = vunpack.c.l.b16 %v1271
    %v1352 = vunpack.c.l.b16 %v1272
    %v1353 = vunpack.c.l.b16 %v1273
    %v1354 = vunpack.c.l.b16 %v1274
    %v1355 = vunpack.c.l.b16 %v1275
    %v1356 = vpack.c.b16 %v1341, %v1340
    %v1357 = vpack.c.b16 %v1343, %v1342
    %v1358 = vpack.c.b16 %v1345, %v1344
    %v1359 = vpack.c.b16 %v1347, %v1346
    %v1360 = vpack.c.b16 %v1349, %v1348
    %v1361 = vpack.c.b16 %v1351, %v1350
    %v1362 = vpack.c.b16 %v1353, %v1352
    %v1363 = vpack.c.b16 %v1355, %v1354
    %1372 = vmatpush.bf16.msra.mxu0 %v1363
    %1373 = vmatpush.bf16.msra.mxu0 %v1362
    %1374 = vmatpush.bf16.msra.mxu0 %v1361
    %1375 = vmatpush.bf16.msra.mxu0 %v1360
    %1376 = vmatpush.bf16.msra.mxu0 %v1359
    %1377 = vmatpush.bf16.msra.mxu0 %v1358
    %1378 = vmatpush.bf16.msra.mxu0 %v1357
    %1379 = vmatpush.bf16.msra.mxu0 %v1356
    %1380 = vmatmul.bf16.gmra.mxu0 %v1308
    %v1381 = vpop.f32.mrf.mxu0
    %v1382 = vadd.f32 0.0, %v1381
    %v1383 = vpop.f32.mrf.mxu0
    %v1384 = vadd.f32 0.0, %v1383
    %1385 = vmatmul.bf16.gmra.mxu0 %v1309
    %v1386 = vpop.f32.mrf.mxu0
    %v1387 = vadd.f32 0.0, %v1386
    %v1388 = vpop.f32.mrf.mxu0
    %v1389 = vadd.f32 0.0, %v1388
    %1390 = vmatmul.bf16.gmra.mxu0 %v1310
    %v1391 = vpop.f32.mrf.mxu0
    %v1392 = vadd.f32 0.0, %v1391
    %v1393 = vpop.f32.mrf.mxu0
    %v1394 = vadd.f32 0.0, %v1393
    %1395 = vmatmul.bf16.gmra.mxu0 %v1311
    %v1396 = vpop.f32.mrf.mxu0
    %v1397 = vadd.f32 0.0, %v1396
    %v1398 = vpop.f32.mrf.mxu0
    %v1399 = vadd.f32 0.0, %v1398
    %1400 = vmatmul.bf16.gmra.mxu0 %v1312
    %v1401 = vpop.f32.mrf.mxu0
    %v1402 = vadd.f32 0.0, %v1401
    %v1403 = vpop.f32.mrf.mxu0
    %v1404 = vadd.f32 0.0, %v1403
    %1405 = vmatmul.bf16.gmra.mxu0 %v1313
    %v1406 = vpop.f32.mrf.mxu0
    %v1407 = vadd.f32 0.0, %v1406
    %v1408 = vpop.f32.mrf.mxu0
    %v1409 = vadd.f32 0.0, %v1408
    %1410 = vmatmul.bf16.gmra.mxu0 %v1314
    %v1411 = vpop.f32.mrf.mxu0
    %v1412 = vadd.f32 0.0, %v1411
    %v1413 = vpop.f32.mrf.mxu0
    %v1414 = vadd.f32 0.0, %v1413
    %1415 = vmatmul.bf16.gmra.mxu0 %v1315
    %v1416 = vpop.f32.mrf.mxu0
    %v1417 = vadd.f32 0.0, %v1416
    %v1418 = vpop.f32.mrf.mxu0
    %v1419 = vadd.f32 0.0, %v1418
    %1420 = vdwg.mxu0
    %v1421 = vld [vmem:[#allocation3] sm:$0xff]
    %v1422 = vld [vmem:[#allocation3 + $0x8] sm:$0xff]
    %v1423 = vld [vmem:[#allocation3 + $0x10] sm:$0xff]
    %v1424 = vld [vmem:[#allocation3 + $0x18] sm:$0xff]
    %v1425 = vld [vmem:[#allocation3 + $0x20] sm:$0xff]
    %v1426 = vld [vmem:[#allocation3 + $0x28] sm:$0xff]
    %v1427 = vld [vmem:[#allocation3 + $0x30] sm:$0xff]
    %v1428 = vld [vmem:[#allocation3 + $0x38] sm:$0xff]
    %v1429 = vld [vmem:[#allocation3 + $0x40] sm:$0xff]
    %v1430 = vld [vmem:[#allocation3 + $0x48] sm:$0xff]
    %v1431 = vld [vmem:[#allocation3 + $0x50] sm:$0xff]
    %v1432 = vld [vmem:[#allocation3 + $0x58] sm:$0xff]
    %v1433 = vld [vmem:[#allocation3 + $0x60] sm:$0xff]
    %v1434 = vld [vmem:[#allocation3 + $0x68] sm:$0xff]
    %v1435 = vld [vmem:[#allocation3 + $0x70] sm:$0xff]
    %v1436 = vld [vmem:[#allocation3 + $0x78] sm:$0xff]
    %v1437 = vadd.f32 %v1421, %v1382
    %v1438 = vadd.f32 %v1422, %v1384
    %v1439 = vadd.f32 %v1423, %v1387
    %v1440 = vadd.f32 %v1424, %v1389
    %v1441 = vadd.f32 %v1425, %v1392
    %v1442 = vadd.f32 %v1426, %v1394
    %v1443 = vadd.f32 %v1427, %v1397
    %v1444 = vadd.f32 %v1428, %v1399
    %v1445 = vadd.f32 %v1429, %v1402
    %v1446 = vadd.f32 %v1430, %v1404
    %v1447 = vadd.f32 %v1431, %v1407
    %v1448 = vadd.f32 %v1432, %v1409
    %v1449 = vadd.f32 %v1433, %v1412
    %v1450 = vadd.f32 %v1434, %v1414
    %v1451 = vadd.f32 %v1435, %v1417
    %v1452 = vadd.f32 %v1436, %v1419
    %1453 = vst [vmem:[#allocation3] sm:$0xff] %v1437
    %1454 = vst [vmem:[#allocation3 + $0x8] sm:$0xff] %v1438
    %1455 = vst [vmem:[#allocation3 + $0x10] sm:$0xff] %v1439
    %1456 = vst [vmem:[#allocation3 + $0x18] sm:$0xff] %v1440
    %1457 = vst [vmem:[#allocation3 + $0x20] sm:$0xff] %v1441
    %1458 = vst [vmem:[#allocation3 + $0x28] sm:$0xff] %v1442
    %1459 = vst [vmem:[#allocation3 + $0x30] sm:$0xff] %v1443
    %1460 = vst [vmem:[#allocation3 + $0x38] sm:$0xff] %v1444
    %1461 = vst [vmem:[#allocation3 + $0x40] sm:$0xff] %v1445
    %1462 = vst [vmem:[#allocation3 + $0x48] sm:$0xff] %v1446
    %1463 = vst [vmem:[#allocation3 + $0x50] sm:$0xff] %v1447
    %1464 = vst [vmem:[#allocation3 + $0x58] sm:$0xff] %v1448
    %1465 = vst [vmem:[#allocation3 + $0x60] sm:$0xff] %v1449
    %1466 = vst [vmem:[#allocation3 + $0x68] sm:$0xff] %v1450
    %1467 = vst [vmem:[#allocation3 + $0x70] sm:$0xff] %v1451
    %1468 = vst [vmem:[#allocation3 + $0x78] sm:$0xff] %v1452
    %v1469 = vld [vmem:[#allocation4] sm:$0xff]
    %v1470 = vld [vmem:[#allocation4 + $0x8] sm:$0xff]
    %v1471 = vld [vmem:[#allocation4 + $0x10] sm:$0xff]
    %v1472 = vld [vmem:[#allocation4 + $0x18] sm:$0xff]
    %v1473 = vld [vmem:[#allocation4 + $0x20] sm:$0xff]
    %v1474 = vld [vmem:[#allocation4 + $0x28] sm:$0xff]
    %v1475 = vld [vmem:[#allocation4 + $0x30] sm:$0xff]
    %v1476 = vld [vmem:[#allocation4 + $0x38] sm:$0xff]
    %v1477 = vld [vmem:[#allocation4 + $0x40] sm:$0xff]
    %v1478 = vld [vmem:[#allocation4 + $0x48] sm:$0xff]
    %v1479 = vld [vmem:[#allocation4 + $0x50] sm:$0xff]
    %v1480 = vld [vmem:[#allocation4 + $0x58] sm:$0xff]
    %v1481 = vld [vmem:[#allocation4 + $0x60] sm:$0xff]
    %v1482 = vld [vmem:[#allocation4 + $0x68] sm:$0xff]
    %v1483 = vld [vmem:[#allocation4 + $0x70] sm:$0xff]
    %v1484 = vld [vmem:[#allocation4 + $0x78] sm:$0xff]
    %v1485 = vmul.f32 %v1469, 0.1
    %v1486 = vmul.f32 %v1470, 0.1
    %v1487 = vmul.f32 %v1471, 0.1
    %v1488 = vmul.f32 %v1472, 0.1
    %v1489 = vmul.f32 %v1473, 0.1
    %v1490 = vmul.f32 %v1474, 0.1
    %v1491 = vmul.f32 %v1475, 0.1
    %v1492 = vmul.f32 %v1476, 0.1
    %v1493 = vmul.f32 %v1477, 0.1
    %v1494 = vmul.f32 %v1478, 0.1
    %v1495 = vmul.f32 %v1479, 0.1
    %v1496 = vmul.f32 %v1480, 0.1
    %v1497 = vmul.f32 %v1481, 0.1
    %v1498 = vmul.f32 %v1482, 0.1
    %v1499 = vmul.f32 %v1483, 0.1
    %v1500 = vmul.f32 %v1484, 0.1
    %v1501 = vld [vmem:[#allocation3] sm:$0xff]
    %v1502 = vld [vmem:[#allocation3 + $0x8] sm:$0xff]
    %v1503 = vld [vmem:[#allocation3 + $0x10] sm:$0xff]
    %v1504 = vld [vmem:[#allocation3 + $0x18] sm:$0xff]
    %v1505 = vld [vmem:[#allocation3 + $0x20] sm:$0xff]
    %v1506 = vld [vmem:[#allocation3 + $0x28] sm:$0xff]
    %v1507 = vld [vmem:[#allocation3 + $0x30] sm:$0xff]
    %v1508 = vld [vmem:[#allocation3 + $0x38] sm:$0xff]
    %v1509 = vld [vmem:[#allocation3 + $0x40] sm:$0xff]
    %v1510 = vld [vmem:[#allocation3 + $0x48] sm:$0xff]
    %v1511 = vld [vmem:[#allocation3 + $0x50] sm:$0xff]
    %v1512 = vld [vmem:[#allocation3 + $0x58] sm:$0xff]
    %v1513 = vld [vmem:[#allocation3 + $0x60] sm:$0xff]
    %v1514 = vld [vmem:[#allocation3 + $0x68] sm:$0xff]
    %v1515 = vld [vmem:[#allocation3 + $0x70] sm:$0xff]
    %v1516 = vld [vmem:[#allocation3 + $0x78] sm:$0xff]
    %v1517 = vmul.f32 %v1501, 0.18
    %v1518 = vmul.f32 %v1502, 0.18
    %v1519 = vmul.f32 %v1503, 0.18
    %v1520 = vmul.f32 %v1504, 0.18
    %v1521 = vmul.f32 %v1505, 0.18
    %v1522 = vmul.f32 %v1506, 0.18
    %v1523 = vmul.f32 %v1507, 0.18
    %v1524 = vmul.f32 %v1508, 0.18
    %v1525 = vmul.f32 %v1509, 0.18
    %v1526 = vmul.f32 %v1510, 0.18
    %v1527 = vmul.f32 %v1511, 0.18
    %v1528 = vmul.f32 %v1512, 0.18
    %v1529 = vmul.f32 %v1513, 0.18
    %v1530 = vmul.f32 %v1514, 0.18
    %v1531 = vmul.f32 %v1515, 0.18
    %v1532 = vmul.f32 %v1516, 0.18
    %v1533 = vadd.f32 %v1485, %v1517
    %v1534 = vadd.f32 %v1486, %v1518
    %v1535 = vadd.f32 %v1487, %v1519
    %v1536 = vadd.f32 %v1488, %v1520
    %v1537 = vadd.f32 %v1489, %v1521
    %v1538 = vadd.f32 %v1490, %v1522
    %v1539 = vadd.f32 %v1491, %v1523
    %v1540 = vadd.f32 %v1492, %v1524
    %v1541 = vadd.f32 %v1493, %v1525
    %v1542 = vadd.f32 %v1494, %v1526
    %v1543 = vadd.f32 %v1495, %v1527
    %v1544 = vadd.f32 %v1496, %v1528
    %v1545 = vadd.f32 %v1497, %v1529
    %v1546 = vadd.f32 %v1498, %v1530
    %v1547 = vadd.f32 %v1499, %v1531
    %v1548 = vadd.f32 %v1500, %v1532
    %v1549 = vld [vmem:[%s3] sm:$0x1]
    %v1551 = vperm.slane %v1549, 0
    %v1553 = vadd.f32 %v1533, %v1551
    %v1554 = vadd.f32 %v1534, %v1551
    %v1555 = vadd.f32 %v1535, %v1551
    %v1556 = vadd.f32 %v1536, %v1551
    %v1557 = vadd.f32 %v1537, %v1551
    %v1558 = vadd.f32 %v1538, %v1551
    %v1559 = vadd.f32 %v1539, %v1551
    %v1560 = vadd.f32 %v1540, %v1551
    %v1561 = vadd.f32 %v1541, %v1551
    %v1562 = vadd.f32 %v1542, %v1551
    %v1563 = vadd.f32 %v1543, %v1551
    %v1564 = vadd.f32 %v1544, %v1551
    %v1565 = vadd.f32 %v1545, %v1551
    %v1566 = vadd.f32 %v1546, %v1551
    %v1567 = vadd.f32 %v1547, %v1551
    %v1568 = vadd.f32 %v1548, %v1551
    %1569 = vst [vmem:[#allocation5] sm:$0xff] %v1553
    %1570 = vst [vmem:[#allocation5 + $0x8] sm:$0xff] %v1554
    %1571 = vst [vmem:[#allocation5 + $0x10] sm:$0xff] %v1555
    %1572 = vst [vmem:[#allocation5 + $0x18] sm:$0xff] %v1556
    %1573 = vst [vmem:[#allocation5 + $0x20] sm:$0xff] %v1557
    %1574 = vst [vmem:[#allocation5 + $0x28] sm:$0xff] %v1558
    %1575 = vst [vmem:[#allocation5 + $0x30] sm:$0xff] %v1559
    %1576 = vst [vmem:[#allocation5 + $0x38] sm:$0xff] %v1560
    %1577 = vst [vmem:[#allocation5 + $0x40] sm:$0xff] %v1561
    %1578 = vst [vmem:[#allocation5 + $0x48] sm:$0xff] %v1562
    %1579 = vst [vmem:[#allocation5 + $0x50] sm:$0xff] %v1563
    %1580 = vst [vmem:[#allocation5 + $0x58] sm:$0xff] %v1564
    %1581 = vst [vmem:[#allocation5 + $0x60] sm:$0xff] %v1565
    %1582 = vst [vmem:[#allocation5 + $0x68] sm:$0xff] %v1566
    %1583 = vst [vmem:[#allocation5 + $0x70] sm:$0xff] %v1567
    %1584 = vst [vmem:[#allocation5 + $0x78] sm:$0xff] %v1568
    // Predicated region
    $region18: #{tpu_custom_call.1} parent=1 // pred_check
      _
    $region19: #{tpu_custom_call.1} parent=1 // pred_check_branch
      %1586 = sbr.rel (0) target = $region21
    $region20: #{tpu_custom_call.1} parent=1 // pred_region
      %1588 = vsyncadd [#allocation6], 0
      %s1589 = sshll.u32 [#allocation5], 4
      %s1590 = int_to_ptr.vmem [resolvable:$true] %s1589
      %s1591 = sshll.u32 %s4, 4
      %s1592 = int_to_ptr.hbm [resolvable:$true] %s1591
      %1597 = dma.vmem_to_hbm [thread:$0]  %s1590, 2048, %s1592, [#allocation6], 128, 128, 8
    $region21: #{tpu_custom_call.1} parent=1 // pred_fallthru
      _
    // Predicated region
    $region22: #{tpu_custom_call.1} parent=1 // pred_check
      _
    $region23: #{tpu_custom_call.1} parent=1 // pred_check_branch
      %1599 = sbr.rel (0) target = $region25
    $region24: #{tpu_custom_call.1} parent=1 // pred_region
      %1601 = dma.done [#allocation6], 2048
    $region25: #{tpu_custom_call.1} parent=1 // pred_fallthru
      _
    %1602 = vsyncpa [#allocation6], 1

</llo_original>
